<compile_context>
chip_gen: v6e
topology: v6e:2x2x1
jax: 0.10.0
libtpu: 0.0.40
codegen_flags: <defaults>
</compile_context>

<pallas_src>
import jax
import jax.numpy as jnp
from jax.experimental import pallas as pl
from jax.experimental.pallas import tpu as pltpu

INPUT_DIM = 3
REPR_DIM = 32
LN_EPS = 1e-5
LANE = 128

# (in, out) per linear layer, matching the PyTorch module.
ENC_DIMS = [(INPUT_DIM, 128), (128, 64), (64, 32), (32, REPR_DIM)]
DEC_DIMS = [(REPR_DIM, 32), (32, 64), (64, 128), (128, INPUT_DIM)]

# Middle layers that run on the MXU: (name, dout, apply LeakyReLU+LayerNorm).
MXU_LAYERS = (
    ("enc1", 64, True),
    ("enc2", 32, True),
    ("enc3", REPR_DIM, False),   # -> latent z
    ("dec0", 32, True),
    ("dec1", 64, True),
    ("dec2", 128, True),
)


def _round_up(n, m):
    return ((n + m - 1) // m) * m


def _build_vec_layout():
    """Row layout of the packed (VEC_ROWS, 128) parameter-vector array."""
    layout = {}
    r = 0
    for k in range(INPUT_DIM):            # encoder layer-0 weight rows (3 x 128)
        layout[f"enc0_w{k}"] = r
        r += 1
    for stack, dims in (("enc", ENC_DIMS), ("dec", DEC_DIMS)):
        for li in range(len(dims)):
            layout[f"{stack}{li}_b"] = r
            r += 1
            if li < len(dims) - 1:        # LayerNorm affine params
                layout[f"{stack}{li}_g"] = r
                r += 1
                layout[f"{stack}{li}_be"] = r
                r += 1
    return layout, _round_up(r, 8)


VEC_LAYOUT, VEC_ROWS = _build_vec_layout()


def _leaky_relu(x):
    # nn.LeakyReLU(0.2)
    return jnp.where(x > 0, x, 0.2 * x)


def _layer_norm(h, gamma, beta, d):
    # Fused statistics: a single pass yields sum and sum-of-squares, halving
    # the cross-lane (XLU) reductions.  Biased variance, eps=1e-5 (matches
    # nn.LayerNorm); done over the true feature width d (no lane padding).
    inv_d = 1.0 / d
    mu = jnp.sum(h, axis=-1, keepdims=True) * inv_d
    m2 = jnp.sum(h * h, axis=-1, keepdims=True) * inv_d
    var = m2 - mu * mu
    return (h - mu) * jax.lax.rsqrt(var + LN_EPS) * gamma + beta


def _vrow(vec_ref, name, width=LANE):
    r = VEC_LAYOUT[name]
    return vec_ref[r:r + 1, :width]       # (1, width), broadcasts over rows


def _make_kernel(matmul_dtype):
    def kernel(x_ref, vec_ref, w_e1, w_e2, w_e3, w_d0, w_d1, w_d2, w_d3s,
               out_ref):
        x = x_ref[...]                                    # (TILE_B, 3) f32

        # ---- Encoder layer 0 (3 -> 128): K=3 wastes an MXU pass, so compute
        #      it as three broadcast multiply-adds on the VPU.
        h = _vrow(vec_ref, "enc0_b")                      # (1, 128)
        for k in range(INPUT_DIM):
            h = h + x[:, k:k + 1] * _vrow(vec_ref, f"enc0_w{k}")
        h = _leaky_relu(h)
        h = _layer_norm(h, _vrow(vec_ref, "enc0_g"),
                        _vrow(vec_ref, "enc0_be"), LANE)

        # ---- Middle layers on the MXU (weights stay VMEM-resident).
        z = None
        for (name, dout, has_ln), w_ref in zip(
                MXU_LAYERS, (w_e1, w_e2, w_e3, w_d0, w_d1, w_d2)):
            h = jnp.dot(h.astype(matmul_dtype),
                        w_ref[...].astype(matmul_dtype),
                        preferred_element_type=jnp.float32)
            h = h + _vrow(vec_ref, f"{name}_b", dout)
            if has_ln:
                h = _leaky_relu(h)
                h = _layer_norm(h, _vrow(vec_ref, f"{name}_g", dout),
                                _vrow(vec_ref, f"{name}_be", dout), dout)
            if name == "enc3":
                z = h                                     # (TILE_B, 32) latent

        # ---- Decoder layer 3 (128 -> 3): folded into a (128, 128) zero-padded
        #      weight slab (same MXU pass count as N=3); the bias row is
        #      pre-placed at lanes [REPR_DIM : REPR_DIM+3], so the result is
        #      already in the lane-dense output layout.
        slab = jnp.dot(h.astype(matmul_dtype),
                       w_d3s[...].astype(matmul_dtype),
                       preferred_element_type=jnp.float32)
        slab = slab + _vrow(vec_ref, "dec3_b")

        out_ref[...] = slab                               # dense 128-lane store
        out_ref[:, :REPR_DIM] = z                         # z into lanes 0:32

    return kernel


def _iter_layers(params):
    """Walk the flat param list in the original (PyTorch-ordered) layout."""
    idx = 0
    layers = []
    for stack, dims in (("enc", ENC_DIMS), ("dec", DEC_DIMS)):
        for li, (din, dout) in enumerate(dims):
            W, b = params[idx], params[idx + 1]
            idx += 2
            g = be = None
            if li < len(dims) - 1:
                g, be = params[idx], params[idx + 1]
                idx += 2
            layers.append((stack, li, din, dout, W, b, g, be))
    return layers


def _pack_params(params):
    """Packs the 28 tensors into (vec_pack (VEC_ROWS,128), [7 weight mats])."""
    vec = jnp.zeros((VEC_ROWS, LANE), jnp.float32)
    mxu_ws = []
    for stack, li, din, dout, W, b, g, be in _iter_layers(params):
        name = f"{stack}{li}"
        is_dec_last = (stack == "dec" and li == len(DEC_DIMS) - 1)
        if is_dec_last:
            # Bias pre-placed in the output-slab lanes.
            vec = vec.at[VEC_LAYOUT[f"{name}_b"],
                         REPR_DIM:REPR_DIM + dout].set(b.reshape(-1))
        else:
            vec = vec.at[VEC_LAYOUT[f"{name}_b"], :dout].set(b.reshape(-1))
        if g is not None:
            vec = vec.at[VEC_LAYOUT[f"{name}_g"], :dout].set(g.reshape(-1))
            vec = vec.at[VEC_LAYOUT[f"{name}_be"], :dout].set(be.reshape(-1))

        if stack == "enc" and li == 0:
            for k in range(INPUT_DIM):                 # rows of the (3,128) W
                vec = vec.at[VEC_LAYOUT[f"enc0_w{k}"], :dout].set(W[k])
        elif is_dec_last:
            w_slab = jnp.zeros((din, LANE), jnp.float32)
            w_slab = w_slab.at[:, REPR_DIM:REPR_DIM + dout].set(W)
            mxu_ws.append(w_slab)                      # (128, 128) padded slab
        else:
            mxu_ws.append(W)
    return vec, mxu_ws


def autoencoder_forward(x, params, *, tile_b=None, matmul_dtype=jnp.float32):
    """Runs the Pallas kernel; returns (x_reconstructed, z)."""
    x = jnp.asarray(x, jnp.float32)
    batch = x.shape[0]
    assert x.shape == (batch, INPUT_DIM)

    if tile_b is None:
        tile_b = min(512, _round_up(max(batch, 8), 8))
    tile_b = _round_up(tile_b, 8)
    padded = _round_up(batch, tile_b)
    if padded != batch:                                # ragged last tile: pad
        x = jnp.pad(x, ((0, padded - batch), (0, 0)))

    vec_pack, mxu_ws = _pack_params(params)

    grid = (padded // tile_b,)
    in_specs = [pl.BlockSpec((tile_b, INPUT_DIM), lambda i: (i, 0)),
                pl.BlockSpec(vec_pack.shape, lambda i: (0, 0))]
    in_specs += [pl.BlockSpec(w.shape, lambda i: (0, 0)) for w in mxu_ws]
    out_specs = pl.BlockSpec((tile_b, LANE), lambda i: (i, 0))

    slab = pl.pallas_call(
        _make_kernel(matmul_dtype),
        out_shape=jax.ShapeDtypeStruct((padded, LANE), jnp.float32),
        grid=grid,
        in_specs=in_specs,
        out_specs=out_specs,
        compiler_params=pltpu.CompilerParams(
            dimension_semantics=("parallel",)),
    )(x, vec_pack, *mxu_ws)

    z = slab[:batch, :REPR_DIM]
    x_rec = slab[:batch, REPR_DIM:REPR_DIM + INPUT_DIM]
    return x_rec, z


def _init_stack(key, dims):
    """PyTorch-style Linear init (uniform +/-1/sqrt(fan_in)); LN gamma=1, beta=0."""
    params = []
    for i, (din, dout) in enumerate(dims):
        key, kw, kb = jax.random.split(key, 3)
        bound = 1.0 / (din ** 0.5)
        W = jax.random.uniform(kw, (din, dout), jnp.float32, -bound, bound)
        b = jax.random.uniform(kb, (1, dout), jnp.float32, -bound, bound)
        params += [W, b]
        if i < len(dims) - 1:
            params += [jnp.ones((1, dout), jnp.float32),
                       jnp.zeros((1, dout), jnp.float32)]
    return params, key


def init_params(key):
    enc, key = _init_stack(key, ENC_DIMS)
    dec, key = _init_stack(key, DEC_DIMS)
    return enc + dec, key


def _reference_forward(x, params):
    """Pure-JAX reference mirroring the PyTorch forward.

    Layer 0 is written as broadcast multiply-adds (mathematically identical to
    x @ W0 + b0) so the comparison is insensitive to the backend's default
    matmul precision for that K=3 contraction, which the kernel evaluates
    exactly on the VPU.
    """
    h = x
    z = None
    for stack, li, din, dout, W, b, g, be in _iter_layers(params):
        if stack == "enc" and li == 0:
            pre = b
            for k in range(INPUT_DIM):
                pre = pre + h[:, k:k + 1] * W[k:k + 1, :]
            h = pre
        else:
            h = h @ W + b
        if g is not None:
            h = _leaky_relu(h)
            mu = jnp.mean(h, axis=-1, keepdims=True)
            var = jnp.mean((h - mu) ** 2, axis=-1, keepdims=True)
            h = (h - mu) * jax.lax.rsqrt(var + LN_EPS) * g + be
        if stack == "enc" and li == len(ENC_DIMS) - 1:
            z = h
    return h, z


if __name__ == "__main__":
    key = jax.random.PRNGKey(0)
    params, key = init_params(key)

    key, kx = jax.random.split(key)
    batch = 200                       # not a multiple of the tile -> exercises
    x = jax.random.normal(kx, (batch, INPUT_DIM), dtype=jnp.float32)

    # tile_b=64 -> 4 grid steps with a ragged (zero-padded) last tile.
    x_rec, z = autoencoder_forward(x, params, tile_b=64)
    jax.block_until_ready((x_rec, z))

    x_rec_ref, z_ref = _reference_forward(x, params)
    assert x_rec.shape == (batch, INPUT_DIM) and z.shape == (batch, REPR_DIM)
    assert jnp.allclose(x_rec, x_rec_ref, atol=5e-4, rtol=5e-4)
    assert jnp.allclose(z, z_ref, atol=5e-4, rtol=5e-4)

    print("KERNEL_OK")
</pallas_src>

<mosaic_0001>
module attributes {stable_mosaic.version = 11 : i64} {
  func.func @kernel(%arg0: i32, %arg1: memref<64x3xf32, #tpu.memory_space<vmem>>, %arg2: memref<24x128xf32, #tpu.memory_space<vmem>>, %arg3: memref<128x64xf32, #tpu.memory_space<vmem>>, %arg4: memref<64x32xf32, #tpu.memory_space<vmem>>, %arg5: memref<32x32xf32, #tpu.memory_space<vmem>>, %arg6: memref<32x32xf32, #tpu.memory_space<vmem>>, %arg7: memref<32x64xf32, #tpu.memory_space<vmem>>, %arg8: memref<64x128xf32, #tpu.memory_space<vmem>>, %arg9: memref<128x128xf32, #tpu.memory_space<vmem>>, %arg10: memref<64x128xf32, #tpu.memory_space<vmem>>) attributes {dimension_semantics = [#tpu.dimension_semantics<parallel>], iteration_bounds = array<i64: 4>, scalar_prefetch = 0 : i64, scratch_operands = 0 : i64, tpu.core_type = #tpu.core_type<tc>, window_params = [{transform_indices = @transform_0, window_bounds = array<i64: 64, 3>}, {pipeline_mode = #tpu.pipeline_mode<synchronous>, transform_indices = @transform_1, window_bounds = array<i64: 24, 128>}, {pipeline_mode = #tpu.pipeline_mode<synchronous>, transform_indices = @transform_2, window_bounds = array<i64: 128, 64>}, {pipeline_mode = #tpu.pipeline_mode<synchronous>, transform_indices = @transform_3, window_bounds = array<i64: 64, 32>}, {pipeline_mode = #tpu.pipeline_mode<synchronous>, transform_indices = @transform_4, window_bounds = array<i64: 32, 32>}, {pipeline_mode = #tpu.pipeline_mode<synchronous>, transform_indices = @transform_5, window_bounds = array<i64: 32, 32>}, {pipeline_mode = #tpu.pipeline_mode<synchronous>, transform_indices = @transform_6, window_bounds = array<i64: 32, 64>}, {pipeline_mode = #tpu.pipeline_mode<synchronous>, transform_indices = @transform_7, window_bounds = array<i64: 64, 128>}, {pipeline_mode = #tpu.pipeline_mode<synchronous>, transform_indices = @transform_8, window_bounds = array<i64: 128, 128>}, {transform_indices = @transform_9, window_bounds = array<i64: 64, 128>}]} {
    %c0 = arith.constant 0 : index
    %c0_0 = arith.constant 0 : index
    %0 = vector.load %arg1[%c0, %c0_0] : memref<64x3xf32, #tpu.memory_space<vmem>>, vector<64x3xf32>
    %c3 = arith.constant 3 : index
    %c0_1 = arith.constant 0 : index
    %1 = vector.load %arg2[%c3, %c0_1] : memref<24x128xf32, #tpu.memory_space<vmem>>, vector<1x128xf32>
    %2 = vector.extract_strided_slice %0 {offsets = [0, 0], sizes = [64, 1], strides = [1, 1]} : vector<64x3xf32> to vector<64x1xf32>
    %c0_2 = arith.constant 0 : index
    %c0_3 = arith.constant 0 : index
    %3 = vector.load %arg2[%c0_2, %c0_3] : memref<24x128xf32, #tpu.memory_space<vmem>>, vector<1x128xf32>
    %4 = vector.broadcast %2 : vector<64x1xf32> to vector<64x128xf32>
    %5 = vector.broadcast %3 : vector<1x128xf32> to vector<64x128xf32>
    %6 = arith.mulf %4, %5 : vector<64x128xf32>
    %7 = vector.broadcast %1 : vector<1x128xf32> to vector<64x128xf32>
    %8 = arith.addf %7, %6 : vector<64x128xf32>
    %9 = vector.extract_strided_slice %0 {offsets = [0, 1], sizes = [64, 1], strides = [1, 1]} : vector<64x3xf32> to vector<64x1xf32>
    %c1 = arith.constant 1 : index
    %c0_4 = arith.constant 0 : index
    %10 = vector.load %arg2[%c1, %c0_4] : memref<24x128xf32, #tpu.memory_space<vmem>>, vector<1x128xf32>
    %11 = vector.broadcast %9 : vector<64x1xf32> to vector<64x128xf32>
    %12 = vector.broadcast %10 : vector<1x128xf32> to vector<64x128xf32>
    %13 = arith.mulf %11, %12 : vector<64x128xf32>
    %14 = arith.addf %8, %13 : vector<64x128xf32>
    %15 = vector.extract_strided_slice %0 {offsets = [0, 2], sizes = [64, 1], strides = [1, 1]} : vector<64x3xf32> to vector<64x1xf32>
    %c2 = arith.constant 2 : index
    %c0_5 = arith.constant 0 : index
    %16 = vector.load %arg2[%c2, %c0_5] : memref<24x128xf32, #tpu.memory_space<vmem>>, vector<1x128xf32>
    %17 = vector.broadcast %15 : vector<64x1xf32> to vector<64x128xf32>
    %18 = vector.broadcast %16 : vector<1x128xf32> to vector<64x128xf32>
    %19 = arith.mulf %17, %18 : vector<64x128xf32>
    %20 = arith.addf %14, %19 : vector<64x128xf32>
    %cst = arith.constant 0.000000e+00 : f32
    %21 = vector.broadcast %cst : f32 to vector<64x128xf32>
    %22 = arith.cmpf ogt, %20, %21 : vector<64x128xf32>
    %cst_6 = arith.constant 2.000000e-01 : f32
    %23 = vector.broadcast %cst_6 : f32 to vector<64x128xf32>
    %24 = arith.mulf %23, %20 : vector<64x128xf32>
    %25 = arith.select %22, %20, %24 : vector<64x128xi1>, vector<64x128xf32>
    %c4 = arith.constant 4 : index
    %c0_7 = arith.constant 0 : index
    %26 = vector.load %arg2[%c4, %c0_7] : memref<24x128xf32, #tpu.memory_space<vmem>>, vector<1x128xf32>
    %c5 = arith.constant 5 : index
    %c0_8 = arith.constant 0 : index
    %27 = vector.load %arg2[%c5, %c0_8] : memref<24x128xf32, #tpu.memory_space<vmem>>, vector<1x128xf32>
    %cst_9 = arith.constant dense<0.000000e+00> : vector<64xf32>
    %28 = vector.multi_reduction <add>, %25, %cst_9 [1] : vector<64x128xf32> to vector<64xf32>
    %29 = vector.shape_cast %28 : vector<64xf32> to vector<64x1xf32>
    %cst_10 = arith.constant 7.812500e-03 : f32
    %30 = vector.broadcast %cst_10 : f32 to vector<64x1xf32>
    %31 = arith.mulf %29, %30 : vector<64x1xf32>
    %32 = arith.mulf %25, %25 : vector<64x128xf32>
    %cst_11 = arith.constant dense<0.000000e+00> : vector<64xf32>
    %33 = vector.multi_reduction <add>, %32, %cst_11 [1] : vector<64x128xf32> to vector<64xf32>
    %34 = vector.shape_cast %33 : vector<64xf32> to vector<64x1xf32>
    %cst_12 = arith.constant 7.812500e-03 : f32
    %35 = vector.broadcast %cst_12 : f32 to vector<64x1xf32>
    %36 = arith.mulf %34, %35 : vector<64x1xf32>
    %37 = arith.mulf %31, %31 : vector<64x1xf32>
    %38 = arith.subf %36, %37 : vector<64x1xf32>
    %39 = vector.broadcast %31 : vector<64x1xf32> to vector<64x128xf32>
    %40 = arith.subf %25, %39 : vector<64x128xf32>
    %cst_13 = arith.constant 9.99999974E-6 : f32
    %41 = vector.broadcast %cst_13 : f32 to vector<64x1xf32>
    %42 = arith.addf %38, %41 : vector<64x1xf32>
    %43 = math.rsqrt %42 : vector<64x1xf32>
    %44 = vector.broadcast %43 : vector<64x1xf32> to vector<64x128xf32>
    %45 = arith.mulf %40, %44 : vector<64x128xf32>
    %46 = vector.broadcast %26 : vector<1x128xf32> to vector<64x128xf32>
    %47 = arith.mulf %45, %46 : vector<64x128xf32>
    %48 = vector.broadcast %27 : vector<1x128xf32> to vector<64x128xf32>
    %49 = arith.addf %47, %48 : vector<64x128xf32>
    %c0_14 = arith.constant 0 : index
    %c0_15 = arith.constant 0 : index
    %50 = vector.load %arg3[%c0_14, %c0_15] : memref<128x64xf32, #tpu.memory_space<vmem>>, vector<128x64xf32>
    %cst_16 = arith.constant dense<0.000000e+00> : vector<64x64xf32>
    %51 = tpu.matmul %49, %50, %cst_16 {dimension_numbers = #tpu.dot_dimension_numbers<[1], [0], [0], [1], [0, 0, 1, 1], [], []>} : vector<64x128xf32>, vector<128x64xf32>, vector<64x64xf32> -> vector<64x64xf32>
    %c6 = arith.constant 6 : index
    %c0_17 = arith.constant 0 : index
    %52 = vector.load %arg2[%c6, %c0_17] : memref<24x128xf32, #tpu.memory_space<vmem>>, vector<1x64xf32>
    %53 = vector.broadcast %52 : vector<1x64xf32> to vector<64x64xf32>
    %54 = arith.addf %51, %53 : vector<64x64xf32>
    %cst_18 = arith.constant 0.000000e+00 : f32
    %55 = vector.broadcast %cst_18 : f32 to vector<64x64xf32>
    %56 = arith.cmpf ogt, %54, %55 : vector<64x64xf32>
    %cst_19 = arith.constant 2.000000e-01 : f32
    %57 = vector.broadcast %cst_19 : f32 to vector<64x64xf32>
    %58 = arith.mulf %57, %54 : vector<64x64xf32>
    %59 = arith.select %56, %54, %58 : vector<64x64xi1>, vector<64x64xf32>
    %c7 = arith.constant 7 : index
    %c0_20 = arith.constant 0 : index
    %60 = vector.load %arg2[%c7, %c0_20] : memref<24x128xf32, #tpu.memory_space<vmem>>, vector<1x64xf32>
    %c8 = arith.constant 8 : index
    %c0_21 = arith.constant 0 : index
    %61 = vector.load %arg2[%c8, %c0_21] : memref<24x128xf32, #tpu.memory_space<vmem>>, vector<1x64xf32>
    %cst_22 = arith.constant dense<0.000000e+00> : vector<64xf32>
    %62 = vector.multi_reduction <add>, %59, %cst_22 [1] : vector<64x64xf32> to vector<64xf32>
    %63 = vector.shape_cast %62 : vector<64xf32> to vector<64x1xf32>
    %cst_23 = arith.constant 1.562500e-02 : f32
    %64 = vector.broadcast %cst_23 : f32 to vector<64x1xf32>
    %65 = arith.mulf %63, %64 : vector<64x1xf32>
    %66 = arith.mulf %59, %59 : vector<64x64xf32>
    %cst_24 = arith.constant dense<0.000000e+00> : vector<64xf32>
    %67 = vector.multi_reduction <add>, %66, %cst_24 [1] : vector<64x64xf32> to vector<64xf32>
    %68 = vector.shape_cast %67 : vector<64xf32> to vector<64x1xf32>
    %cst_25 = arith.constant 1.562500e-02 : f32
    %69 = vector.broadcast %cst_25 : f32 to vector<64x1xf32>
    %70 = arith.mulf %68, %69 : vector<64x1xf32>
    %71 = arith.mulf %65, %65 : vector<64x1xf32>
    %72 = arith.subf %70, %71 : vector<64x1xf32>
    %73 = vector.broadcast %65 : vector<64x1xf32> to vector<64x64xf32>
    %74 = arith.subf %59, %73 : vector<64x64xf32>
    %cst_26 = arith.constant 9.99999974E-6 : f32
    %75 = vector.broadcast %cst_26 : f32 to vector<64x1xf32>
    %76 = arith.addf %72, %75 : vector<64x1xf32>
    %77 = math.rsqrt %76 : vector<64x1xf32>
    %78 = vector.broadcast %77 : vector<64x1xf32> to vector<64x64xf32>
    %79 = arith.mulf %74, %78 : vector<64x64xf32>
    %80 = vector.broadcast %60 : vector<1x64xf32> to vector<64x64xf32>
    %81 = arith.mulf %79, %80 : vector<64x64xf32>
    %82 = vector.broadcast %61 : vector<1x64xf32> to vector<64x64xf32>
    %83 = arith.addf %81, %82 : vector<64x64xf32>
    %c0_27 = arith.constant 0 : index
    %c0_28 = arith.constant 0 : index
    %84 = vector.load %arg4[%c0_27, %c0_28] : memref<64x32xf32, #tpu.memory_space<vmem>>, vector<64x32xf32>
    %cst_29 = arith.constant dense<0.000000e+00> : vector<64x32xf32>
    %85 = tpu.matmul %83, %84, %cst_29 {dimension_numbers = #tpu.dot_dimension_numbers<[1], [0], [0], [1], [0, 0, 1, 1], [], []>} : vector<64x64xf32>, vector<64x32xf32>, vector<64x32xf32> -> vector<64x32xf32>
    %c9 = arith.constant 9 : index
    %c0_30 = arith.constant 0 : index
    %86 = vector.load %arg2[%c9, %c0_30] : memref<24x128xf32, #tpu.memory_space<vmem>>, vector<1x32xf32>
    %87 = vector.broadcast %86 : vector<1x32xf32> to vector<64x32xf32>
    %88 = arith.addf %85, %87 : vector<64x32xf32>
    %cst_31 = arith.constant 0.000000e+00 : f32
    %89 = vector.broadcast %cst_31 : f32 to vector<64x32xf32>
    %90 = arith.cmpf ogt, %88, %89 : vector<64x32xf32>
    %cst_32 = arith.constant 2.000000e-01 : f32
    %91 = vector.broadcast %cst_32 : f32 to vector<64x32xf32>
    %92 = arith.mulf %91, %88 : vector<64x32xf32>
    %93 = arith.select %90, %88, %92 : vector<64x32xi1>, vector<64x32xf32>
    %c10 = arith.constant 10 : index
    %c0_33 = arith.constant 0 : index
    %94 = vector.load %arg2[%c10, %c0_33] : memref<24x128xf32, #tpu.memory_space<vmem>>, vector<1x32xf32>
    %c11 = arith.constant 11 : index
    %c0_34 = arith.constant 0 : index
    %95 = vector.load %arg2[%c11, %c0_34] : memref<24x128xf32, #tpu.memory_space<vmem>>, vector<1x32xf32>
    %cst_35 = arith.constant dense<0.000000e+00> : vector<64xf32>
    %96 = vector.multi_reduction <add>, %93, %cst_35 [1] : vector<64x32xf32> to vector<64xf32>
    %97 = vector.shape_cast %96 : vector<64xf32> to vector<64x1xf32>
    %cst_36 = arith.constant 3.125000e-02 : f32
    %98 = vector.broadcast %cst_36 : f32 to vector<64x1xf32>
    %99 = arith.mulf %97, %98 : vector<64x1xf32>
    %100 = arith.mulf %93, %93 : vector<64x32xf32>
    %cst_37 = arith.constant dense<0.000000e+00> : vector<64xf32>
    %101 = vector.multi_reduction <add>, %100, %cst_37 [1] : vector<64x32xf32> to vector<64xf32>
    %102 = vector.shape_cast %101 : vector<64xf32> to vector<64x1xf32>
    %cst_38 = arith.constant 3.125000e-02 : f32
    %103 = vector.broadcast %cst_38 : f32 to vector<64x1xf32>
    %104 = arith.mulf %102, %103 : vector<64x1xf32>
    %105 = arith.mulf %99, %99 : vector<64x1xf32>
    %106 = arith.subf %104, %105 : vector<64x1xf32>
    %107 = vector.broadcast %99 : vector<64x1xf32> to vector<64x32xf32>
    %108 = arith.subf %93, %107 : vector<64x32xf32>
    %cst_39 = arith.constant 9.99999974E-6 : f32
    %109 = vector.broadcast %cst_39 : f32 to vector<64x1xf32>
    %110 = arith.addf %106, %109 : vector<64x1xf32>
    %111 = math.rsqrt %110 : vector<64x1xf32>
    %112 = vector.broadcast %111 : vector<64x1xf32> to vector<64x32xf32>
    %113 = arith.mulf %108, %112 : vector<64x32xf32>
    %114 = vector.broadcast %94 : vector<1x32xf32> to vector<64x32xf32>
    %115 = arith.mulf %113, %114 : vector<64x32xf32>
    %116 = vector.broadcast %95 : vector<1x32xf32> to vector<64x32xf32>
    %117 = arith.addf %115, %116 : vector<64x32xf32>
    %c0_40 = arith.constant 0 : index
    %c0_41 = arith.constant 0 : index
    %118 = vector.load %arg5[%c0_40, %c0_41] : memref<32x32xf32, #tpu.memory_space<vmem>>, vector<32x32xf32>
    %cst_42 = arith.constant dense<0.000000e+00> : vector<64x32xf32>
    %119 = tpu.matmul %117, %118, %cst_42 {dimension_numbers = #tpu.dot_dimension_numbers<[1], [0], [0], [1], [0, 0, 1, 1], [], []>} : vector<64x32xf32>, vector<32x32xf32>, vector<64x32xf32> -> vector<64x32xf32>
    %c12 = arith.constant 12 : index
    %c0_43 = arith.constant 0 : index
    %120 = vector.load %arg2[%c12, %c0_43] : memref<24x128xf32, #tpu.memory_space<vmem>>, vector<1x32xf32>
    %121 = vector.broadcast %120 : vector<1x32xf32> to vector<64x32xf32>
    %122 = arith.addf %119, %121 : vector<64x32xf32>
    %c0_44 = arith.constant 0 : index
    %c0_45 = arith.constant 0 : index
    %123 = vector.load %arg6[%c0_44, %c0_45] : memref<32x32xf32, #tpu.memory_space<vmem>>, vector<32x32xf32>
    %cst_46 = arith.constant dense<0.000000e+00> : vector<64x32xf32>
    %124 = tpu.matmul %122, %123, %cst_46 {dimension_numbers = #tpu.dot_dimension_numbers<[1], [0], [0], [1], [0, 0, 1, 1], [], []>} : vector<64x32xf32>, vector<32x32xf32>, vector<64x32xf32> -> vector<64x32xf32>
    %c13 = arith.constant 13 : index
    %c0_47 = arith.constant 0 : index
    %125 = vector.load %arg2[%c13, %c0_47] : memref<24x128xf32, #tpu.memory_space<vmem>>, vector<1x32xf32>
    %126 = vector.broadcast %125 : vector<1x32xf32> to vector<64x32xf32>
    %127 = arith.addf %124, %126 : vector<64x32xf32>
    %cst_48 = arith.constant 0.000000e+00 : f32
    %128 = vector.broadcast %cst_48 : f32 to vector<64x32xf32>
    %129 = arith.cmpf ogt, %127, %128 : vector<64x32xf32>
    %cst_49 = arith.constant 2.000000e-01 : f32
    %130 = vector.broadcast %cst_49 : f32 to vector<64x32xf32>
    %131 = arith.mulf %130, %127 : vector<64x32xf32>
    %132 = arith.select %129, %127, %131 : vector<64x32xi1>, vector<64x32xf32>
    %c14 = arith.constant 14 : index
    %c0_50 = arith.constant 0 : index
    %133 = vector.load %arg2[%c14, %c0_50] : memref<24x128xf32, #tpu.memory_space<vmem>>, vector<1x32xf32>
    %c15 = arith.constant 15 : index
    %c0_51 = arith.constant 0 : index
    %134 = vector.load %arg2[%c15, %c0_51] : memref<24x128xf32, #tpu.memory_space<vmem>>, vector<1x32xf32>
    %cst_52 = arith.constant dense<0.000000e+00> : vector<64xf32>
    %135 = vector.multi_reduction <add>, %132, %cst_52 [1] : vector<64x32xf32> to vector<64xf32>
    %136 = vector.shape_cast %135 : vector<64xf32> to vector<64x1xf32>
    %cst_53 = arith.constant 3.125000e-02 : f32
    %137 = vector.broadcast %cst_53 : f32 to vector<64x1xf32>
    %138 = arith.mulf %136, %137 : vector<64x1xf32>
    %139 = arith.mulf %132, %132 : vector<64x32xf32>
    %cst_54 = arith.constant dense<0.000000e+00> : vector<64xf32>
    %140 = vector.multi_reduction <add>, %139, %cst_54 [1] : vector<64x32xf32> to vector<64xf32>
    %141 = vector.shape_cast %140 : vector<64xf32> to vector<64x1xf32>
    %cst_55 = arith.constant 3.125000e-02 : f32
    %142 = vector.broadcast %cst_55 : f32 to vector<64x1xf32>
    %143 = arith.mulf %141, %142 : vector<64x1xf32>
    %144 = arith.mulf %138, %138 : vector<64x1xf32>
    %145 = arith.subf %143, %144 : vector<64x1xf32>
    %146 = vector.broadcast %138 : vector<64x1xf32> to vector<64x32xf32>
    %147 = arith.subf %132, %146 : vector<64x32xf32>
    %cst_56 = arith.constant 9.99999974E-6 : f32
    %148 = vector.broadcast %cst_56 : f32 to vector<64x1xf32>
    %149 = arith.addf %145, %148 : vector<64x1xf32>
    %150 = math.rsqrt %149 : vector<64x1xf32>
    %151 = vector.broadcast %150 : vector<64x1xf32> to vector<64x32xf32>
    %152 = arith.mulf %147, %151 : vector<64x32xf32>
    %153 = vector.broadcast %133 : vector<1x32xf32> to vector<64x32xf32>
    %154 = arith.mulf %152, %153 : vector<64x32xf32>
    %155 = vector.broadcast %134 : vector<1x32xf32> to vector<64x32xf32>
    %156 = arith.addf %154, %155 : vector<64x32xf32>
    %c0_57 = arith.constant 0 : index
    %c0_58 = arith.constant 0 : index
    %157 = vector.load %arg7[%c0_57, %c0_58] : memref<32x64xf32, #tpu.memory_space<vmem>>, vector<32x64xf32>
    %cst_59 = arith.constant dense<0.000000e+00> : vector<64x64xf32>
    %158 = tpu.matmul %156, %157, %cst_59 {dimension_numbers = #tpu.dot_dimension_numbers<[1], [0], [0], [1], [0, 0, 1, 1], [], []>} : vector<64x32xf32>, vector<32x64xf32>, vector<64x64xf32> -> vector<64x64xf32>
    %c16 = arith.constant 16 : index
    %c0_60 = arith.constant 0 : index
    %159 = vector.load %arg2[%c16, %c0_60] : memref<24x128xf32, #tpu.memory_space<vmem>>, vector<1x64xf32>
    %160 = vector.broadcast %159 : vector<1x64xf32> to vector<64x64xf32>
    %161 = arith.addf %158, %160 : vector<64x64xf32>
    %cst_61 = arith.constant 0.000000e+00 : f32
    %162 = vector.broadcast %cst_61 : f32 to vector<64x64xf32>
    %163 = arith.cmpf ogt, %161, %162 : vector<64x64xf32>
    %cst_62 = arith.constant 2.000000e-01 : f32
    %164 = vector.broadcast %cst_62 : f32 to vector<64x64xf32>
    %165 = arith.mulf %164, %161 : vector<64x64xf32>
    %166 = arith.select %163, %161, %165 : vector<64x64xi1>, vector<64x64xf32>
    %c17 = arith.constant 17 : index
    %c0_63 = arith.constant 0 : index
    %167 = vector.load %arg2[%c17, %c0_63] : memref<24x128xf32, #tpu.memory_space<vmem>>, vector<1x64xf32>
    %c18 = arith.constant 18 : index
    %c0_64 = arith.constant 0 : index
    %168 = vector.load %arg2[%c18, %c0_64] : memref<24x128xf32, #tpu.memory_space<vmem>>, vector<1x64xf32>
    %cst_65 = arith.constant dense<0.000000e+00> : vector<64xf32>
    %169 = vector.multi_reduction <add>, %166, %cst_65 [1] : vector<64x64xf32> to vector<64xf32>
    %170 = vector.shape_cast %169 : vector<64xf32> to vector<64x1xf32>
    %cst_66 = arith.constant 1.562500e-02 : f32
    %171 = vector.broadcast %cst_66 : f32 to vector<64x1xf32>
    %172 = arith.mulf %170, %171 : vector<64x1xf32>
    %173 = arith.mulf %166, %166 : vector<64x64xf32>
    %cst_67 = arith.constant dense<0.000000e+00> : vector<64xf32>
    %174 = vector.multi_reduction <add>, %173, %cst_67 [1] : vector<64x64xf32> to vector<64xf32>
    %175 = vector.shape_cast %174 : vector<64xf32> to vector<64x1xf32>
    %cst_68 = arith.constant 1.562500e-02 : f32
    %176 = vector.broadcast %cst_68 : f32 to vector<64x1xf32>
    %177 = arith.mulf %175, %176 : vector<64x1xf32>
    %178 = arith.mulf %172, %172 : vector<64x1xf32>
    %179 = arith.subf %177, %178 : vector<64x1xf32>
    %180 = vector.broadcast %172 : vector<64x1xf32> to vector<64x64xf32>
    %181 = arith.subf %166, %180 : vector<64x64xf32>
    %cst_69 = arith.constant 9.99999974E-6 : f32
    %182 = vector.broadcast %cst_69 : f32 to vector<64x1xf32>
    %183 = arith.addf %179, %182 : vector<64x1xf32>
    %184 = math.rsqrt %183 : vector<64x1xf32>
    %185 = vector.broadcast %184 : vector<64x1xf32> to vector<64x64xf32>
    %186 = arith.mulf %181, %185 : vector<64x64xf32>
    %187 = vector.broadcast %167 : vector<1x64xf32> to vector<64x64xf32>
    %188 = arith.mulf %186, %187 : vector<64x64xf32>
    %189 = vector.broadcast %168 : vector<1x64xf32> to vector<64x64xf32>
    %190 = arith.addf %188, %189 : vector<64x64xf32>
    %c0_70 = arith.constant 0 : index
    %c0_71 = arith.constant 0 : index
    %191 = vector.load %arg8[%c0_70, %c0_71] : memref<64x128xf32, #tpu.memory_space<vmem>>, vector<64x128xf32>
    %cst_72 = arith.constant dense<0.000000e+00> : vector<64x128xf32>
    %192 = tpu.matmul %190, %191, %cst_72 {dimension_numbers = #tpu.dot_dimension_numbers<[1], [0], [0], [1], [0, 0, 1, 1], [], []>} : vector<64x64xf32>, vector<64x128xf32>, vector<64x128xf32> -> vector<64x128xf32>
    %c19 = arith.constant 19 : index
    %c0_73 = arith.constant 0 : index
    %193 = vector.load %arg2[%c19, %c0_73] : memref<24x128xf32, #tpu.memory_space<vmem>>, vector<1x128xf32>
    %194 = vector.broadcast %193 : vector<1x128xf32> to vector<64x128xf32>
    %195 = arith.addf %192, %194 : vector<64x128xf32>
    %cst_74 = arith.constant 0.000000e+00 : f32
    %196 = vector.broadcast %cst_74 : f32 to vector<64x128xf32>
    %197 = arith.cmpf ogt, %195, %196 : vector<64x128xf32>
    %cst_75 = arith.constant 2.000000e-01 : f32
    %198 = vector.broadcast %cst_75 : f32 to vector<64x128xf32>
    %199 = arith.mulf %198, %195 : vector<64x128xf32>
    %200 = arith.select %197, %195, %199 : vector<64x128xi1>, vector<64x128xf32>
    %c20 = arith.constant 20 : index
    %c0_76 = arith.constant 0 : index
    %201 = vector.load %arg2[%c20, %c0_76] : memref<24x128xf32, #tpu.memory_space<vmem>>, vector<1x128xf32>
    %c21 = arith.constant 21 : index
    %c0_77 = arith.constant 0 : index
    %202 = vector.load %arg2[%c21, %c0_77] : memref<24x128xf32, #tpu.memory_space<vmem>>, vector<1x128xf32>
    %cst_78 = arith.constant dense<0.000000e+00> : vector<64xf32>
    %203 = vector.multi_reduction <add>, %200, %cst_78 [1] : vector<64x128xf32> to vector<64xf32>
    %204 = vector.shape_cast %203 : vector<64xf32> to vector<64x1xf32>
    %cst_79 = arith.constant 7.812500e-03 : f32
    %205 = vector.broadcast %cst_79 : f32 to vector<64x1xf32>
    %206 = arith.mulf %204, %205 : vector<64x1xf32>
    %207 = arith.mulf %200, %200 : vector<64x128xf32>
    %cst_80 = arith.constant dense<0.000000e+00> : vector<64xf32>
    %208 = vector.multi_reduction <add>, %207, %cst_80 [1] : vector<64x128xf32> to vector<64xf32>
    %209 = vector.shape_cast %208 : vector<64xf32> to vector<64x1xf32>
    %cst_81 = arith.constant 7.812500e-03 : f32
    %210 = vector.broadcast %cst_81 : f32 to vector<64x1xf32>
    %211 = arith.mulf %209, %210 : vector<64x1xf32>
    %212 = arith.mulf %206, %206 : vector<64x1xf32>
    %213 = arith.subf %211, %212 : vector<64x1xf32>
    %214 = vector.broadcast %206 : vector<64x1xf32> to vector<64x128xf32>
    %215 = arith.subf %200, %214 : vector<64x128xf32>
    %cst_82 = arith.constant 9.99999974E-6 : f32
    %216 = vector.broadcast %cst_82 : f32 to vector<64x1xf32>
    %217 = arith.addf %213, %216 : vector<64x1xf32>
    %218 = math.rsqrt %217 : vector<64x1xf32>
    %219 = vector.broadcast %218 : vector<64x1xf32> to vector<64x128xf32>
    %220 = arith.mulf %215, %219 : vector<64x128xf32>
    %221 = vector.broadcast %201 : vector<1x128xf32> to vector<64x128xf32>
    %222 = arith.mulf %220, %221 : vector<64x128xf32>
    %223 = vector.broadcast %202 : vector<1x128xf32> to vector<64x128xf32>
    %224 = arith.addf %222, %223 : vector<64x128xf32>
    %c0_83 = arith.constant 0 : index
    %c0_84 = arith.constant 0 : index
    %225 = vector.load %arg9[%c0_83, %c0_84] : memref<128x128xf32, #tpu.memory_space<vmem>>, vector<128x128xf32>
    %cst_85 = arith.constant dense<0.000000e+00> : vector<64x128xf32>
    %226 = tpu.matmul %224, %225, %cst_85 {dimension_numbers = #tpu.dot_dimension_numbers<[1], [0], [0], [1], [0, 0, 1, 1], [], []>} : vector<64x128xf32>, vector<128x128xf32>, vector<64x128xf32> -> vector<64x128xf32>
    %c22 = arith.constant 22 : index
    %c0_86 = arith.constant 0 : index
    %227 = vector.load %arg2[%c22, %c0_86] : memref<24x128xf32, #tpu.memory_space<vmem>>, vector<1x128xf32>
    %228 = vector.broadcast %227 : vector<1x128xf32> to vector<64x128xf32>
    %229 = arith.addf %226, %228 : vector<64x128xf32>
    %c0_87 = arith.constant 0 : index
    %c0_88 = arith.constant 0 : index
    %230 = vector.load %arg10[%c0_87, %c0_88] : memref<64x128xf32, #tpu.memory_space<vmem>>, vector<64x128xf32>
    tpu.vector_store %arg10[%c0_87, %c0_88], %229 {strides = array<i32>} : memref<64x128xf32, #tpu.memory_space<vmem>>, vector<64x128xf32>,
    %c0_89 = arith.constant 0 : index
    %c0_90 = arith.constant 0 : index
    %231 = vector.load %arg10[%c0_89, %c0_90] : memref<64x128xf32, #tpu.memory_space<vmem>>, vector<64x32xf32>
    tpu.vector_store %arg10[%c0_89, %c0_90], %122 {strides = array<i32>} : memref<64x128xf32, #tpu.memory_space<vmem>>, vector<64x32xf32>,
    return
  }
  func.func @transform_0(%arg0: i32) -> (i32, i32) {
    %c0_i32 = arith.constant 0 : i32
    %c0_i32_0 = arith.constant 0 : i32
    return %arg0, %c0_i32 : i32, i32
  }
  func.func @transform_1(%arg0: i32) -> (i32, i32) {
    %c0_i32 = arith.constant 0 : i32
    %c0_i32_0 = arith.constant 0 : i32
    %c0_i32_1 = arith.constant 0 : i32
    return %c0_i32, %c0_i32_0 : i32, i32
  }
  func.func @transform_2(%arg0: i32) -> (i32, i32) {
    %c0_i32 = arith.constant 0 : i32
    %c0_i32_0 = arith.constant 0 : i32
    %c0_i32_1 = arith.constant 0 : i32
    return %c0_i32, %c0_i32_0 : i32, i32
  }
  func.func @transform_3(%arg0: i32) -> (i32, i32) {
    %c0_i32 = arith.constant 0 : i32
    %c0_i32_0 = arith.constant 0 : i32
    %c0_i32_1 = arith.constant 0 : i32
    return %c0_i32, %c0_i32_0 : i32, i32
  }
  func.func @transform_4(%arg0: i32) -> (i32, i32) {
    %c0_i32 = arith.constant 0 : i32
    %c0_i32_0 = arith.constant 0 : i32
    %c0_i32_1 = arith.constant 0 : i32
    return %c0_i32, %c0_i32_0 : i32, i32
  }
  func.func @transform_5(%arg0: i32) -> (i32, i32) {
    %c0_i32 = arith.constant 0 : i32
    %c0_i32_0 = arith.constant 0 : i32
    %c0_i32_1 = arith.constant 0 : i32
    return %c0_i32, %c0_i32_0 : i32, i32
  }
  func.func @transform_6(%arg0: i32) -> (i32, i32) {
    %c0_i32 = arith.constant 0 : i32
    %c0_i32_0 = arith.constant 0 : i32
    %c0_i32_1 = arith.constant 0 : i32
    return %c0_i32, %c0_i32_0 : i32, i32
  }
  func.func @transform_7(%arg0: i32) -> (i32, i32) {
    %c0_i32 = arith.constant 0 : i32
    %c0_i32_0 = arith.constant 0 : i32
    %c0_i32_1 = arith.constant 0 : i32
    return %c0_i32, %c0_i32_0 : i32, i32
  }
  func.func @transform_8(%arg0: i32) -> (i32, i32) {
    %c0_i32 = arith.constant 0 : i32
    %c0_i32_0 = arith.constant 0 : i32
    %c0_i32_1 = arith.constant 0 : i32
    return %c0_i32, %c0_i32_0 : i32, i32
  }
  func.func @transform_9(%arg0: i32) -> (i32, i32) {
    %c0_i32 = arith.constant 0 : i32
    %c0_i32_0 = arith.constant 0 : i32
    return %arg0, %c0_i32 : i32, i32
  }
}

</mosaic_0001>

<llo_original>
// kernel: tpu_custom_call.1
$region0: #{tpu_custom_call.1}
  #allocation0 [shape = 'u32[]', space=smem, size = 0x4, offset = 0x4, fixed_abs, tag = 'smem constant byte address 0x4 - core index']
  #allocation1 [shape = 'u32[144,128]{1,0:T(1,128)}', space=vmem, size = 0x12000, scoped, tag = 'internal scratch']
  %s0 = inlined_call_operand.vmem [shape: f32[256,3], index: 0, kind: input, shape index: {}]
  %s1 = inlined_call_operand.vmem [shape: f32[24,128], index: 1, kind: input, shape index: {}]
  %s2 = inlined_call_operand.vmem [shape: f32[128,64], index: 2, kind: input, shape index: {}]
  %s3 = inlined_call_operand.vmem [shape: f32[64,32], index: 3, kind: input, shape index: {}]
  %s4 = inlined_call_operand.vmem [shape: f32[32,32], index: 4, kind: input, shape index: {}]
  %s5 = inlined_call_operand.vmem [shape: f32[32,32], index: 5, kind: input, shape index: {}]
  %s6 = inlined_call_operand.vmem [shape: f32[32,64], index: 6, kind: input, shape index: {}]
  %s7 = inlined_call_operand.vmem [shape: f32[64,128], index: 7, kind: input, shape index: {}]
  %s8 = inlined_call_operand.vmem [shape: f32[128,128], index: 8, kind: input, shape index: {}]
  %s9 = inlined_call_operand.hbm [shape: f32[256,128], index: 9, kind: output, shape index: {}]
  %s10 = sld [smem:[#allocation0]]
  $region69: #{tpu_custom_call.1} parent=0
    _
  %s12 = ssub.s32 1, %s10
  %s13 = scalar_select 0, %s12, %s10
  $region1: #{tpu_custom_call.1} parent=0
    #allocation2 [shape = 'u8[65536]{0}', space=vmem, size = 0x10000, scoped, tag = 'output window, operand 0']
    #allocation3 [shape = 's32[2]{0}', space=sflag, size = 0x8, scoped, tag = 'scoped memory for tpu_custom_call.1']
    %14 = vsyncpa [#allocation3], 0
    %s15 = scalar_lea.sflag [#allocation3], 1
    %16 = vsyncpa %s15, 0
    loop: start=0, step=1, limit=6
    $region2: #{tpu_custom_call.1} parent=1 // loop_pre_header
      _
    $region3: #{tpu_custom_call.1} parent=1 // loop_header
      %s18 = sphi 0, %s22
      %p19 = scmp.ge.s32.totalorder %s18, 6
      %s28 = sphi 0, %s30
      %s31 = sphi 0, %s28
      %s32 = sphi 0, %s31
      %s48 = sphi 0, %s32
      %s52 = sphi 0, %s52
      %s54 = sphi 0, %s52
      %s55 = sphi 0, %s54
      %s69 = sphi 0, %s55
      %s73 = sphi 0, %s73
      %s75 = sphi 0, %s73
      %s76 = sphi 0, %s75
      %s90 = sphi 0, %s76
      %s94 = sphi 0, %s94
      %s96 = sphi 0, %s94
      %s97 = sphi 0, %s96
      %s111 = sphi 0, %s97
      %s115 = sphi 0, %s115
      %s117 = sphi 0, %s115
      %s118 = sphi 0, %s117
      %s132 = sphi 0, %s118
      %s136 = sphi 0, %s136
      %s138 = sphi 0, %s136
      %s139 = sphi 0, %s138
      %s153 = sphi 0, %s139
      %s157 = sphi 0, %s157
      %s159 = sphi 0, %s157
      %s160 = sphi 0, %s159
      %s174 = sphi 0, %s160
      %s178 = sphi 0, %s178
      %s180 = sphi 0, %s178
      %s181 = sphi 0, %s180
      %s195 = sphi 0, %s181
      %s199 = sphi 0, %s199
      %s201 = sphi 0, %s199
      %s202 = sphi 0, %s201
      %s216 = sphi 0, %s202
      %s222 = sphi 0, %s224
      %s225 = sphi 0, %s222
      %s226 = sphi 0, %s225
      %s242 = sphi 0, %s226
    $region4: #{tpu_custom_call.1} parent=1 // loop_header_branch
      %21 = sbr.rel (%p19) target = $region8
    $region5: #{tpu_custom_call.1} parent=1 // loop_body
      %s23 = ssub.s32 %s18, 1
      %s24 = ssub.s32 %s18, 2
      %s25 = sadd.s32 %s18, 1
      %s26 = ssub.s32 %s18, %s25
      %p27 = scmp.eq.s32.totalorder %s26, 0
      %s29 = sadd.s32 %s28, 1
      %s30 = scalar_select %p27, %s28, %s29
      %p33 = pneg %p27
      %p34 = scmp.eq.s32.totalorder %s18, 3
      %p35 = por %p33, %p34
      %p36 = scmp.ne.s32.totalorder %s28, %s31
      %p37 = scmp.eq.s32.totalorder %s18, 0
      %p38 = por %p36, %p37
      %p39 = scmp.ne.s32.totalorder %s28, %s31
      %p40 = scmp.eq.s32.totalorder %s23, 3
      %p41 = por %p39, %p40
      %p42 = scmp.ne.s32.totalorder %s31, %s32
      %p43 = scmp.eq.s32.totalorder %s23, 0
      %p44 = por %p42, %p43
      %p45 = scmp.ne.s32.totalorder %s31, %s32
      %p46 = scmp.eq.s32.totalorder %s24, 3
      %p47 = por %p45, %p46
      %p49 = scmp.ne.s32.totalorder %s32, %s48
      %p50 = scmp.eq.s32.totalorder %s24, 0
      %p51 = por %p49, %p50
      %s53 = sadd.s32 %s52, 1
      %p56 = scmp.eq.s32.totalorder %s18, 3
      %p57 = scmp.ne.s32.totalorder %s52, %s54
      %p58 = scmp.eq.s32.totalorder %s18, 0
      %p59 = por %p57, %p58
      %p60 = scmp.ne.s32.totalorder %s52, %s54
      %p61 = scmp.eq.s32.totalorder %s23, 3
      %p62 = por %p60, %p61
      %p63 = scmp.ne.s32.totalorder %s54, %s55
      %p64 = scmp.eq.s32.totalorder %s23, 0
      %p65 = por %p63, %p64
      %p66 = scmp.ne.s32.totalorder %s54, %s55
      %p67 = scmp.eq.s32.totalorder %s24, 3
      %p68 = por %p66, %p67
      %p70 = scmp.ne.s32.totalorder %s55, %s69
      %p71 = scmp.eq.s32.totalorder %s24, 0
      %p72 = por %p70, %p71
      %s74 = sadd.s32 %s73, 1
      %p77 = scmp.eq.s32.totalorder %s18, 3
      %p78 = scmp.ne.s32.totalorder %s73, %s75
      %p79 = scmp.eq.s32.totalorder %s18, 0
      %p80 = por %p78, %p79
      %p81 = scmp.ne.s32.totalorder %s73, %s75
      %p82 = scmp.eq.s32.totalorder %s23, 3
      %p83 = por %p81, %p82
      %p84 = scmp.ne.s32.totalorder %s75, %s76
      %p85 = scmp.eq.s32.totalorder %s23, 0
      %p86 = por %p84, %p85
      %p87 = scmp.ne.s32.totalorder %s75, %s76
      %p88 = scmp.eq.s32.totalorder %s24, 3
      %p89 = por %p87, %p88
      %p91 = scmp.ne.s32.totalorder %s76, %s90
      %p92 = scmp.eq.s32.totalorder %s24, 0
      %p93 = por %p91, %p92
      %s95 = sadd.s32 %s94, 1
      %p98 = scmp.eq.s32.totalorder %s18, 3
      %p99 = scmp.ne.s32.totalorder %s94, %s96
      %p100 = scmp.eq.s32.totalorder %s18, 0
      %p101 = por %p99, %p100
      %p102 = scmp.ne.s32.totalorder %s94, %s96
      %p103 = scmp.eq.s32.totalorder %s23, 3
      %p104 = por %p102, %p103
      %p105 = scmp.ne.s32.totalorder %s96, %s97
      %p106 = scmp.eq.s32.totalorder %s23, 0
      %p107 = por %p105, %p106
      %p108 = scmp.ne.s32.totalorder %s96, %s97
      %p109 = scmp.eq.s32.totalorder %s24, 3
      %p110 = por %p108, %p109
      %p112 = scmp.ne.s32.totalorder %s97, %s111
      %p113 = scmp.eq.s32.totalorder %s24, 0
      %p114 = por %p112, %p113
      %s116 = sadd.s32 %s115, 1
      %p119 = scmp.eq.s32.totalorder %s18, 3
      %p120 = scmp.ne.s32.totalorder %s115, %s117
      %p121 = scmp.eq.s32.totalorder %s18, 0
      %p122 = por %p120, %p121
      %p123 = scmp.ne.s32.totalorder %s115, %s117
      %p124 = scmp.eq.s32.totalorder %s23, 3
      %p125 = por %p123, %p124
      %p126 = scmp.ne.s32.totalorder %s117, %s118
      %p127 = scmp.eq.s32.totalorder %s23, 0
      %p128 = por %p126, %p127
      %p129 = scmp.ne.s32.totalorder %s117, %s118
      %p130 = scmp.eq.s32.totalorder %s24, 3
      %p131 = por %p129, %p130
      %p133 = scmp.ne.s32.totalorder %s118, %s132
      %p134 = scmp.eq.s32.totalorder %s24, 0
      %p135 = por %p133, %p134
      %s137 = sadd.s32 %s136, 1
      %p140 = scmp.eq.s32.totalorder %s18, 3
      %p141 = scmp.ne.s32.totalorder %s136, %s138
      %p142 = scmp.eq.s32.totalorder %s18, 0
      %p143 = por %p141, %p142
      %p144 = scmp.ne.s32.totalorder %s136, %s138
      %p145 = scmp.eq.s32.totalorder %s23, 3
      %p146 = por %p144, %p145
      %p147 = scmp.ne.s32.totalorder %s138, %s139
      %p148 = scmp.eq.s32.totalorder %s23, 0
      %p149 = por %p147, %p148
      %p150 = scmp.ne.s32.totalorder %s138, %s139
      %p151 = scmp.eq.s32.totalorder %s24, 3
      %p152 = por %p150, %p151
      %p154 = scmp.ne.s32.totalorder %s139, %s153
      %p155 = scmp.eq.s32.totalorder %s24, 0
      %p156 = por %p154, %p155
      %s158 = sadd.s32 %s157, 1
      %p161 = scmp.eq.s32.totalorder %s18, 3
      %p162 = scmp.ne.s32.totalorder %s157, %s159
      %p163 = scmp.eq.s32.totalorder %s18, 0
      %p164 = por %p162, %p163
      %p165 = scmp.ne.s32.totalorder %s157, %s159
      %p166 = scmp.eq.s32.totalorder %s23, 3
      %p167 = por %p165, %p166
      %p168 = scmp.ne.s32.totalorder %s159, %s160
      %p169 = scmp.eq.s32.totalorder %s23, 0
      %p170 = por %p168, %p169
      %p171 = scmp.ne.s32.totalorder %s159, %s160
      %p172 = scmp.eq.s32.totalorder %s24, 3
      %p173 = por %p171, %p172
      %p175 = scmp.ne.s32.totalorder %s160, %s174
      %p176 = scmp.eq.s32.totalorder %s24, 0
      %p177 = por %p175, %p176
      %s179 = sadd.s32 %s178, 1
      %p182 = scmp.eq.s32.totalorder %s18, 3
      %p183 = scmp.ne.s32.totalorder %s178, %s180
      %p184 = scmp.eq.s32.totalorder %s18, 0
      %p185 = por %p183, %p184
      %p186 = scmp.ne.s32.totalorder %s178, %s180
      %p187 = scmp.eq.s32.totalorder %s23, 3
      %p188 = por %p186, %p187
      %p189 = scmp.ne.s32.totalorder %s180, %s181
      %p190 = scmp.eq.s32.totalorder %s23, 0
      %p191 = por %p189, %p190
      %p192 = scmp.ne.s32.totalorder %s180, %s181
      %p193 = scmp.eq.s32.totalorder %s24, 3
      %p194 = por %p192, %p193
      %p196 = scmp.ne.s32.totalorder %s181, %s195
      %p197 = scmp.eq.s32.totalorder %s24, 0
      %p198 = por %p196, %p197
      %s200 = sadd.s32 %s199, 1
      %p203 = scmp.eq.s32.totalorder %s18, 3
      %p204 = scmp.ne.s32.totalorder %s199, %s201
      %p205 = scmp.eq.s32.totalorder %s18, 0
      %p206 = por %p204, %p205
      %p207 = scmp.ne.s32.totalorder %s199, %s201
      %p208 = scmp.eq.s32.totalorder %s23, 3
      %p209 = por %p207, %p208
      %p210 = scmp.ne.s32.totalorder %s201, %s202
      %p211 = scmp.eq.s32.totalorder %s23, 0
      %p212 = por %p210, %p211
      %p213 = scmp.ne.s32.totalorder %s201, %s202
      %p214 = scmp.eq.s32.totalorder %s24, 3
      %p215 = por %p213, %p214
      %p217 = scmp.ne.s32.totalorder %s202, %s216
      %p218 = scmp.eq.s32.totalorder %s24, 0
      %p219 = por %p217, %p218
      %s220 = ssub.s32 %s18, %s25
      %p221 = scmp.eq.s32.totalorder %s220, 0
      %s223 = sadd.s32 %s222, 1
      %s224 = scalar_select %p221, %s222, %s223
      %p227 = pneg %p221
      %p228 = scmp.eq.s32.totalorder %s18, 3
      %p229 = por %p227, %p228
      %p230 = scmp.ne.s32.totalorder %s222, %s225
      %p231 = scmp.eq.s32.totalorder %s18, 0
      %p232 = por %p230, %p231
      %p233 = scmp.ne.s32.totalorder %s222, %s225
      %p234 = scmp.eq.s32.totalorder %s23, 3
      %p235 = por %p233, %p234
      %p236 = scmp.ne.s32.totalorder %s225, %s226
      %p237 = scmp.eq.s32.totalorder %s23, 0
      %p238 = por %p236, %p237
      %p239 = scmp.ne.s32.totalorder %s225, %s226
      %p240 = scmp.eq.s32.totalorder %s24, 3
      %p241 = por %p239, %p240
      %p243 = scmp.ne.s32.totalorder %s226, %s242
      %p244 = scmp.eq.s32.totalorder %s24, 0
      %p245 = por %p243, %p244
      %p246 = scmp.le.s32.totalorder 1, %s18
      %p247 = scmp.lt.s32.totalorder %s18, 5
      %p248 = pnand %p246, %p247
      %p249 = pneg %p248
      // Predicated region
      $region9: #{tpu_custom_call.1} parent=5 // pred_check
        _
      $region10: #{tpu_custom_call.1} parent=5 // pred_check_branch
        %251 = sbr.rel (%p248) target = $region12
      $region11: #{tpu_custom_call.1} parent=5 // pred_region
        %s252 = ssub.s32 %s18, 1
        // Predicated region
        $region13: #{tpu_custom_call.1} parent=11 // pred_check
          %p253 = pneg %p65
        $region14: #{tpu_custom_call.1} parent=11 // pred_check_branch
          %255 = sbr.rel (%p253) target = $region16
        $region15: #{tpu_custom_call.1} parent=11 // pred_region
          _
        $region16: #{tpu_custom_call.1} parent=11 // pred_fallthru
          _
        // Predicated region
        $region17: #{tpu_custom_call.1} parent=11 // pred_check
          %p256 = pneg %p86
        $region18: #{tpu_custom_call.1} parent=11 // pred_check_branch
          %258 = sbr.rel (%p256) target = $region20
        $region19: #{tpu_custom_call.1} parent=11 // pred_region
          _
        $region20: #{tpu_custom_call.1} parent=11 // pred_fallthru
          _
        // Predicated region
        $region21: #{tpu_custom_call.1} parent=11 // pred_check
          %p259 = pneg %p107
        $region22: #{tpu_custom_call.1} parent=11 // pred_check_branch
          %261 = sbr.rel (%p259) target = $region24
        $region23: #{tpu_custom_call.1} parent=11 // pred_region
          _
        $region24: #{tpu_custom_call.1} parent=11 // pred_fallthru
          _
        // Predicated region
        $region25: #{tpu_custom_call.1} parent=11 // pred_check
          %p262 = pneg %p128
        $region26: #{tpu_custom_call.1} parent=11 // pred_check_branch
          %264 = sbr.rel (%p262) target = $region28
        $region27: #{tpu_custom_call.1} parent=11 // pred_region
          _
        $region28: #{tpu_custom_call.1} parent=11 // pred_fallthru
          _
        // Predicated region
        $region29: #{tpu_custom_call.1} parent=11 // pred_check
          %p265 = pneg %p149
        $region30: #{tpu_custom_call.1} parent=11 // pred_check_branch
          %267 = sbr.rel (%p265) target = $region32
        $region31: #{tpu_custom_call.1} parent=11 // pred_region
          _
        $region32: #{tpu_custom_call.1} parent=11 // pred_fallthru
          _
        // Predicated region
        $region33: #{tpu_custom_call.1} parent=11 // pred_check
          %p268 = pneg %p170
        $region34: #{tpu_custom_call.1} parent=11 // pred_check_branch
          %270 = sbr.rel (%p268) target = $region36
        $region35: #{tpu_custom_call.1} parent=11 // pred_region
          _
        $region36: #{tpu_custom_call.1} parent=11 // pred_fallthru
          _
        // Predicated region
        $region37: #{tpu_custom_call.1} parent=11 // pred_check
          %p271 = pneg %p191
        $region38: #{tpu_custom_call.1} parent=11 // pred_check_branch
          %273 = sbr.rel (%p271) target = $region40
        $region39: #{tpu_custom_call.1} parent=11 // pred_region
          _
        $region40: #{tpu_custom_call.1} parent=11 // pred_fallthru
          _
        // Predicated region
        $region41: #{tpu_custom_call.1} parent=11 // pred_check
          %p274 = pneg %p212
        $region42: #{tpu_custom_call.1} parent=11 // pred_check_branch
          %276 = sbr.rel (%p274) target = $region44
        $region43: #{tpu_custom_call.1} parent=11 // pred_region
          _
        $region44: #{tpu_custom_call.1} parent=11 // pred_fallthru
          _
      $region12: #{tpu_custom_call.1} parent=5 // pred_fallthru
        _
      %p277 = scmp.lt.s32.totalorder %s18, 4
      // Predicated region
      $region45: #{tpu_custom_call.1} parent=5 // pred_check
        %p278 = pneg %p277
      $region46: #{tpu_custom_call.1} parent=5 // pred_check_branch
        %280 = sbr.rel (%p278) target = $region48
      $region47: #{tpu_custom_call.1} parent=5 // pred_region
        // Predicated region
        $region49: #{tpu_custom_call.1} parent=47 // pred_check
          %p281 = pneg %p38
        $region50: #{tpu_custom_call.1} parent=47 // pred_check_branch
          %283 = sbr.rel (%p281) target = $region52
        $region51: #{tpu_custom_call.1} parent=47 // pred_region
          %s284 = smul.u32 8, %s18
          %p285 = scmp.lt.s32.totalorder %s284, 31
          %s286 = scalar_select %p285, %s284, 31
          %s287 = smul.addr %s286, 8
          %s288 = scalar_lea.vmem %s0, %s287
          %s289 = smul.u32 8, %s18
        $region52: #{tpu_custom_call.1} parent=47 // pred_fallthru
          _
      $region48: #{tpu_custom_call.1} parent=5 // pred_fallthru
        _
      %p290 = scmp.le.s32.totalorder 1, %s18
      %p291 = scmp.lt.s32.totalorder %s18, 5
      %p292 = pnand %p290, %p291
      %p293 = pneg %p292
      // Predicated region
      $region53: #{tpu_custom_call.1} parent=5 // pred_check
        _
      $region54: #{tpu_custom_call.1} parent=5 // pred_check_branch
        %295 = sbr.rel (%p292) target = $region56
      $region55: #{tpu_custom_call.1} parent=5 // pred_region
        %s296 = ssub.s32 %s18, 1
        %s297 = smul.u32 8, %s23
        %p298 = scmp.lt.s32.totalorder %s297, 31
        %s299 = scalar_select %p298, %s297, 31
        %s300 = smul.addr %s299, 8
        %s301 = scalar_lea.vmem %s0, %s300
        %p302 = pneg %p44
        %p303 = pneg %p41
        %p304 = pneg %p65
        %p305 = pneg %p62
        %p306 = pneg %p86
        %p307 = pneg %p83
        %p308 = pneg %p107
        %p309 = pneg %p104
        %p310 = pneg %p128
        %p311 = pneg %p125
        %p312 = pneg %p149
        %p313 = pneg %p146
        %p314 = pneg %p170
        %p315 = pneg %p167
        %p316 = pneg %p191
        %p317 = pneg %p188
        %p318 = pneg %p212
        %p319 = pneg %p209
        %p320 = pneg %p238
        %p321 = pneg %p235
        %s322 = sand.u32 %s225, 1
        %s323 = scalar_lea.sflag [#allocation3], %s322
        %s324 = sand.u32 %s225, 1
        %s325 = smul.addr %s324, 64
        %s326 = scalar_lea.vmem [#allocation2], %s325
        %s327 = smul.u32 8, %s23
        %p328 = scmp.lt.s32.totalorder %s327, 31
        %s329 = scalar_select %p328, %s327, 31
        %s330 = smul.addr %s329, 8
        %s331 = scalar_lea.vmem %s0, %s330
        %s332 = smul.u32 8, %s23
        %s333 = smul.u32 8, %s23
        %v334 = vld [vmem:[%s331] sm:$0xff]
        %v335 = vld [vmem:[%s331 + $0x8] sm:$0xff]
        %v336 = vld [vmem:[%s331 + $0x10] sm:$0xff]
        %v337 = vld [vmem:[%s331 + $0x18] sm:$0xff]
        %v338 = vld [vmem:[%s331 + $0x20] sm:$0xff]
        %v339 = vld [vmem:[%s331 + $0x28] sm:$0xff]
        %v340 = vld [vmem:[%s331 + $0x30] sm:$0xff]
        %v341 = vld [vmem:[%s331 + $0x38] sm:$0xff]
        %v342 = vld [vmem:[%s1 + $0x3] sm:$0x1]
        %v343 = vld [vmem:[%s1] sm:$0x1]
        %345 = vset.pattern.permute.xlu0 0
        %346 = vperm.xlu0 %345, %v334
        %v347 = vpop.permute.xlu0 %346
        %350 = vset.pattern.permute.xlu0 0
        %351 = vperm.xlu0 %350, %v335
        %v352 = vpop.permute.xlu0 %351
        %355 = vset.pattern.permute.xlu0 0
        %356 = vperm.xlu0 %355, %v336
        %v357 = vpop.permute.xlu0 %356
        %360 = vset.pattern.permute.xlu0 0
        %361 = vperm.xlu0 %360, %v337
        %v362 = vpop.permute.xlu0 %361
        %365 = vset.pattern.permute.xlu0 0
        %366 = vperm.xlu0 %365, %v338
        %v367 = vpop.permute.xlu0 %366
        %370 = vset.pattern.permute.xlu0 0
        %371 = vperm.xlu0 %370, %v339
        %v372 = vpop.permute.xlu0 %371
        %375 = vset.pattern.permute.xlu0 0
        %376 = vperm.xlu0 %375, %v340
        %v377 = vpop.permute.xlu0 %376
        %380 = vset.pattern.permute.xlu0 0
        %381 = vperm.xlu0 %380, %v341
        %v382 = vpop.permute.xlu0 %381
        %v384 = vlaneseq
        %v385 = vshrl.u32 %v384, 7
        %v386 = vsub.s32 0, %v385
        %v387 = vrot.slane %v343, %v386
        %v388 = vmul.f32 %v347, %v387
        %v389 = vmul.f32 %v352, %v387
        %v390 = vmul.f32 %v357, %v387
        %v391 = vmul.f32 %v362, %v387
        %v392 = vmul.f32 %v367, %v387
        %v393 = vmul.f32 %v372, %v387
        %v394 = vmul.f32 %v377, %v387
        %v395 = vmul.f32 %v382, %v387
        %v396 = vlaneseq
        %v397 = vshrl.u32 %v396, 7
        %v398 = vsub.s32 0, %v397
        %v399 = vrot.slane %v342, %v398
        %v400 = vadd.f32 %v399, %v388
        %v401 = vadd.f32 %v399, %v389
        %v402 = vadd.f32 %v399, %v390
        %v403 = vadd.f32 %v399, %v391
        %v404 = vadd.f32 %v399, %v392
        %v405 = vadd.f32 %v399, %v393
        %v406 = vadd.f32 %v399, %v394
        %v407 = vadd.f32 %v399, %v395
        %v408 = vld [vmem:[%s1 + $0x1] sm:$0x1]
        %409 = vset.pattern.permute.xlu0 1
        %410 = vperm.xlu0 %409, %v334
        %v411 = vpop.permute.xlu0 %410
        %413 = vset.pattern.permute.xlu0 1
        %414 = vperm.xlu0 %413, %v335
        %v415 = vpop.permute.xlu0 %414
        %417 = vset.pattern.permute.xlu0 1
        %418 = vperm.xlu0 %417, %v336
        %v419 = vpop.permute.xlu0 %418
        %421 = vset.pattern.permute.xlu0 1
        %422 = vperm.xlu0 %421, %v337
        %v423 = vpop.permute.xlu0 %422
        %425 = vset.pattern.permute.xlu0 1
        %426 = vperm.xlu0 %425, %v338
        %v427 = vpop.permute.xlu0 %426
        %429 = vset.pattern.permute.xlu0 1
        %430 = vperm.xlu0 %429, %v339
        %v431 = vpop.permute.xlu0 %430
        %433 = vset.pattern.permute.xlu0 1
        %434 = vperm.xlu0 %433, %v340
        %v435 = vpop.permute.xlu0 %434
        %437 = vset.pattern.permute.xlu0 1
        %438 = vperm.xlu0 %437, %v341
        %v439 = vpop.permute.xlu0 %438
        %v441 = vlaneseq
        %v442 = vshrl.u32 %v441, 7
        %v443 = vsub.s32 0, %v442
        %v444 = vrot.slane %v408, %v443
        %v445 = vmul.f32 %v411, %v444
        %v446 = vmul.f32 %v415, %v444
        %v447 = vmul.f32 %v419, %v444
        %v448 = vmul.f32 %v423, %v444
        %v449 = vmul.f32 %v427, %v444
        %v450 = vmul.f32 %v431, %v444
        %v451 = vmul.f32 %v435, %v444
        %v452 = vmul.f32 %v439, %v444
        %v453 = vadd.f32 %v400, %v445
        %v454 = vadd.f32 %v401, %v446
        %v455 = vadd.f32 %v402, %v447
        %v456 = vadd.f32 %v403, %v448
        %v457 = vadd.f32 %v404, %v449
        %v458 = vadd.f32 %v405, %v450
        %v459 = vadd.f32 %v406, %v451
        %v460 = vadd.f32 %v407, %v452
        %v461 = vld [vmem:[%s1 + $0x2] sm:$0x1]
        %462 = vset.pattern.permute.xlu0 2
        %463 = vperm.xlu0 %462, %v334
        %v464 = vpop.permute.xlu0 %463
        %466 = vset.pattern.permute.xlu0 2
        %467 = vperm.xlu0 %466, %v335
        %v468 = vpop.permute.xlu0 %467
        %470 = vset.pattern.permute.xlu0 2
        %471 = vperm.xlu0 %470, %v336
        %v472 = vpop.permute.xlu0 %471
        %474 = vset.pattern.permute.xlu0 2
        %475 = vperm.xlu0 %474, %v337
        %v476 = vpop.permute.xlu0 %475
        %478 = vset.pattern.permute.xlu0 2
        %479 = vperm.xlu0 %478, %v338
        %v480 = vpop.permute.xlu0 %479
        %482 = vset.pattern.permute.xlu0 2
        %483 = vperm.xlu0 %482, %v339
        %v484 = vpop.permute.xlu0 %483
        %486 = vset.pattern.permute.xlu0 2
        %487 = vperm.xlu0 %486, %v340
        %v488 = vpop.permute.xlu0 %487
        %490 = vset.pattern.permute.xlu0 2
        %491 = vperm.xlu0 %490, %v341
        %v492 = vpop.permute.xlu0 %491
        %v494 = vlaneseq
        %v495 = vshrl.u32 %v494, 7
        %v496 = vsub.s32 0, %v495
        %v497 = vrot.slane %v461, %v496
        %v498 = vmul.f32 %v464, %v497
        %v499 = vmul.f32 %v468, %v497
        %v500 = vmul.f32 %v472, %v497
        %v501 = vmul.f32 %v476, %v497
        %v502 = vmul.f32 %v480, %v497
        %v503 = vmul.f32 %v484, %v497
        %v504 = vmul.f32 %v488, %v497
        %v505 = vmul.f32 %v492, %v497
        %v506 = vadd.f32 %v453, %v498
        %v507 = vadd.f32 %v454, %v499
        %v508 = vadd.f32 %v455, %v500
        %v509 = vadd.f32 %v456, %v501
        %v510 = vadd.f32 %v457, %v502
        %v511 = vadd.f32 %v458, %v503
        %v512 = vadd.f32 %v459, %v504
        %v513 = vadd.f32 %v460, %v505
        %vm514 = vcmp.gt.f32.partialorder %v506, 0.0
        %vm515 = vcmp.gt.f32.partialorder %v507, 0.0
        %vm516 = vcmp.gt.f32.partialorder %v508, 0.0
        %vm517 = vcmp.gt.f32.partialorder %v509, 0.0
        %vm518 = vcmp.gt.f32.partialorder %v510, 0.0
        %vm519 = vcmp.gt.f32.partialorder %v511, 0.0
        %vm520 = vcmp.gt.f32.partialorder %v512, 0.0
        %vm521 = vcmp.gt.f32.partialorder %v513, 0.0
        %v522 = vmul.f32 %v506, 0.2
        %v523 = vmul.f32 %v507, 0.2
        %v524 = vmul.f32 %v508, 0.2
        %v525 = vmul.f32 %v509, 0.2
        %v526 = vmul.f32 %v510, 0.2
        %v527 = vmul.f32 %v511, 0.2
        %v528 = vmul.f32 %v512, 0.2
        %v529 = vmul.f32 %v513, 0.2
        %v530 = vsel %vm514, %v506, %v522
        %v531 = vsel %vm515, %v507, %v523
        %v532 = vsel %vm516, %v508, %v524
        %v533 = vsel %vm517, %v509, %v525
        %v534 = vsel %vm518, %v510, %v526
        %v535 = vsel %vm519, %v511, %v527
        %v536 = vsel %vm520, %v512, %v528
        %v537 = vsel %vm521, %v513, %v529
        %v538 = vld [vmem:[%s1 + $0x4] sm:$0x1]
        %v539 = vld [vmem:[%s1 + $0x5] sm:$0x1]
        %540 = vadd.xlane.f32.xlu0 %v530
        %v541 = vpop.xlane.xlu0 %540
        %542 = vadd.xlane.f32.xlu0 %v531
        %v543 = vpop.xlane.xlu0 %542
        %544 = vadd.xlane.f32.xlu0 %v532
        %v545 = vpop.xlane.xlu0 %544
        %546 = vadd.xlane.f32.xlu0 %v533
        %v547 = vpop.xlane.xlu0 %546
        %548 = vadd.xlane.f32.xlu0 %v534
        %v549 = vpop.xlane.xlu0 %548
        %550 = vadd.xlane.f32.xlu0 %v535
        %v551 = vpop.xlane.xlu0 %550
        %552 = vadd.xlane.f32.xlu0 %v536
        %v553 = vpop.xlane.xlu0 %552
        %554 = vadd.xlane.f32.xlu0 %v537
        %v555 = vpop.xlane.xlu0 %554
        %v556 = vmul.f32 %v541, 0.0078125
        %v557 = vmul.f32 %v543, 0.0078125
        %v558 = vmul.f32 %v545, 0.0078125
        %v559 = vmul.f32 %v547, 0.0078125
        %v560 = vmul.f32 %v549, 0.0078125
        %v561 = vmul.f32 %v551, 0.0078125
        %v562 = vmul.f32 %v553, 0.0078125
        %v563 = vmul.f32 %v555, 0.0078125
        %v564 = vmul.f32 %v530, %v530
        %v565 = vmul.f32 %v531, %v531
        %v566 = vmul.f32 %v532, %v532
        %v567 = vmul.f32 %v533, %v533
        %v568 = vmul.f32 %v534, %v534
        %v569 = vmul.f32 %v535, %v535
        %v570 = vmul.f32 %v536, %v536
        %v571 = vmul.f32 %v537, %v537
        %572 = vadd.xlane.f32.xlu0 %v564
        %v573 = vpop.xlane.xlu0 %572
        %574 = vadd.xlane.f32.xlu0 %v565
        %v575 = vpop.xlane.xlu0 %574
        %576 = vadd.xlane.f32.xlu0 %v566
        %v577 = vpop.xlane.xlu0 %576
        %578 = vadd.xlane.f32.xlu0 %v567
        %v579 = vpop.xlane.xlu0 %578
        %580 = vadd.xlane.f32.xlu0 %v568
        %v581 = vpop.xlane.xlu0 %580
        %582 = vadd.xlane.f32.xlu0 %v569
        %v583 = vpop.xlane.xlu0 %582
        %584 = vadd.xlane.f32.xlu0 %v570
        %v585 = vpop.xlane.xlu0 %584
        %586 = vadd.xlane.f32.xlu0 %v571
        %v587 = vpop.xlane.xlu0 %586
        %v588 = vmul.f32 %v573, 0.0078125
        %v589 = vmul.f32 %v575, 0.0078125
        %v590 = vmul.f32 %v577, 0.0078125
        %v591 = vmul.f32 %v579, 0.0078125
        %v592 = vmul.f32 %v581, 0.0078125
        %v593 = vmul.f32 %v583, 0.0078125
        %v594 = vmul.f32 %v585, 0.0078125
        %v595 = vmul.f32 %v587, 0.0078125
        %v596 = vmul.f32 %v556, %v556
        %v597 = vmul.f32 %v557, %v557
        %v598 = vmul.f32 %v558, %v558
        %v599 = vmul.f32 %v559, %v559
        %v600 = vmul.f32 %v560, %v560
        %v601 = vmul.f32 %v561, %v561
        %v602 = vmul.f32 %v562, %v562
        %v603 = vmul.f32 %v563, %v563
        %v604 = vsub.f32 %v588, %v596
        %v605 = vsub.f32 %v589, %v597
        %v606 = vsub.f32 %v590, %v598
        %v607 = vsub.f32 %v591, %v599
        %v608 = vsub.f32 %v592, %v600
        %v609 = vsub.f32 %v593, %v601
        %v610 = vsub.f32 %v594, %v602
        %v611 = vsub.f32 %v595, %v603
        %v612 = vsub.f32 %v530, %v556
        %v613 = vsub.f32 %v531, %v557
        %v614 = vsub.f32 %v532, %v558
        %v615 = vsub.f32 %v533, %v559
        %v616 = vsub.f32 %v534, %v560
        %v617 = vsub.f32 %v535, %v561
        %v618 = vsub.f32 %v536, %v562
        %v619 = vsub.f32 %v537, %v563
        %v620 = vadd.f32 %v604, 1e-05
        %v621 = vadd.f32 %v605, 1e-05
        %v622 = vadd.f32 %v606, 1e-05
        %v623 = vadd.f32 %v607, 1e-05
        %v624 = vadd.f32 %v608, 1e-05
        %v625 = vadd.f32 %v609, 1e-05
        %v626 = vadd.f32 %v610, 1e-05
        %v627 = vadd.f32 %v611, 1e-05
        %v628 = vrsqrt.pop %v620
        %v629 = vrsqrt.pop %v621
        %v630 = vrsqrt.pop %v622
        %v631 = vrsqrt.pop %v623
        %v632 = vrsqrt.pop %v624
        %v633 = vrsqrt.pop %v625
        %v634 = vrsqrt.pop %v626
        %v635 = vrsqrt.pop %v627
        %v636 = vmul.f32 %v612, %v628
        %v637 = vmul.f32 %v613, %v629
        %v638 = vmul.f32 %v614, %v630
        %v639 = vmul.f32 %v615, %v631
        %v640 = vmul.f32 %v616, %v632
        %v641 = vmul.f32 %v617, %v633
        %v642 = vmul.f32 %v618, %v634
        %v643 = vmul.f32 %v619, %v635
        %v644 = vlaneseq
        %v645 = vshrl.u32 %v644, 7
        %v646 = vsub.s32 0, %v645
        %v647 = vrot.slane %v538, %v646
        %v648 = vmul.f32 %v636, %v647
        %v649 = vmul.f32 %v637, %v647
        %v650 = vmul.f32 %v638, %v647
        %v651 = vmul.f32 %v639, %v647
        %v652 = vmul.f32 %v640, %v647
        %v653 = vmul.f32 %v641, %v647
        %v654 = vmul.f32 %v642, %v647
        %v655 = vmul.f32 %v643, %v647
        %v656 = vlaneseq
        %v657 = vshrl.u32 %v656, 7
        %v658 = vsub.s32 0, %v657
        %v659 = vrot.slane %v539, %v658
        %v660 = vadd.f32 %v648, %v659
        %v661 = vadd.f32 %v649, %v659
        %v662 = vadd.f32 %v650, %v659
        %v663 = vadd.f32 %v651, %v659
        %v664 = vadd.f32 %v652, %v659
        %v665 = vadd.f32 %v653, %v659
        %v666 = vadd.f32 %v654, %v659
        %v667 = vadd.f32 %v655, %v659
        %v668 = vld [vmem:[%s2] sm:$0xff]
        %v669 = vld [vmem:[%s2 + $0x8] sm:$0xff]
        %v670 = vld [vmem:[%s2 + $0x10] sm:$0xff]
        %v671 = vld [vmem:[%s2 + $0x18] sm:$0xff]
        %v672 = vld [vmem:[%s2 + $0x20] sm:$0xff]
        %v673 = vld [vmem:[%s2 + $0x28] sm:$0xff]
        %v674 = vld [vmem:[%s2 + $0x30] sm:$0xff]
        %v675 = vld [vmem:[%s2 + $0x38] sm:$0xff]
        %v676 = vld [vmem:[%s2 + $0x40] sm:$0xff]
        %v677 = vld [vmem:[%s2 + $0x48] sm:$0xff]
        %v678 = vld [vmem:[%s2 + $0x50] sm:$0xff]
        %v679 = vld [vmem:[%s2 + $0x58] sm:$0xff]
        %v680 = vld [vmem:[%s2 + $0x60] sm:$0xff]
        %v681 = vld [vmem:[%s2 + $0x68] sm:$0xff]
        %v682 = vld [vmem:[%s2 + $0x70] sm:$0xff]
        %v683 = vld [vmem:[%s2 + $0x78] sm:$0xff]
        %v684 = vld [vmem:[%s1 + $0x6] sm:$0x1]
        %v685 = vlaneseq
        %v686 = vshrl.u32 %v685, 7
        %v687 = vsub.s32 0, %v686
        %v688 = vrot.slane %v684, %v687
        %689 = vmatprep.subr.mxu0 0.0
        %690 = vmatpush1.msra.mxu0 %v683
        %691 = vmatprep.subr.mxu0 0.0
        %692 = vmatpush1.msra.mxu0 %v682
        %693 = vmatprep.subr.mxu0 0.0
        %694 = vmatpush1.msra.mxu0 %v681
        %695 = vmatprep.subr.mxu0 0.0
        %696 = vmatpush1.msra.mxu0 %v680
        %697 = vmatprep.subr.mxu0 0.0
        %698 = vmatpush1.msra.mxu0 %v679
        %699 = vmatprep.subr.mxu0 0.0
        %700 = vmatpush1.msra.mxu0 %v678
        %701 = vmatprep.subr.mxu0 0.0
        %702 = vmatpush1.msra.mxu0 %v677
        %703 = vmatprep.subr.mxu0 0.0
        %704 = vmatpush1.msra.mxu0 %v676
        %705 = vmatprep.subr.mxu0 0.0
        %706 = vmatpush1.msra.mxu0 %v675
        %707 = vmatprep.subr.mxu0 0.0
        %708 = vmatpush1.msra.mxu0 %v674
        %709 = vmatprep.subr.mxu0 0.0
        %710 = vmatpush1.msra.mxu0 %v673
        %711 = vmatprep.subr.mxu0 0.0
        %712 = vmatpush1.msra.mxu0 %v672
        %713 = vmatprep.subr.mxu0 0.0
        %714 = vmatpush1.msra.mxu0 %v671
        %715 = vmatprep.subr.mxu0 0.0
        %716 = vmatpush1.msra.mxu0 %v670
        %717 = vmatprep.subr.mxu0 0.0
        %718 = vmatpush1.msra.mxu0 %v669
        %719 = vmatprep.subr.mxu0 0.0
        %720 = vmatpush1.msra.mxu0 %v668
        %721 = vmatprep.subr.mxu0 0.0
        %722 = vmatpush2.msra.mxu0 0.0
        %723 = vmatprep.subr.mxu0 0.0
        %724 = vmatpush2.msra.mxu0 0.0
        %725 = vmatprep.subr.mxu0 0.0
        %726 = vmatpush2.msra.mxu0 0.0
        %727 = vmatprep.subr.mxu0 0.0
        %728 = vmatpush2.msra.mxu0 0.0
        %729 = vmatprep.subr.mxu0 0.0
        %730 = vmatpush2.msra.mxu0 0.0
        %731 = vmatprep.subr.mxu0 0.0
        %732 = vmatpush2.msra.mxu0 0.0
        %733 = vmatprep.subr.mxu0 0.0
        %734 = vmatpush2.msra.mxu0 0.0
        %735 = vmatprep.subr.mxu0 0.0
        %736 = vmatpush2.msra.mxu0 0.0
        %737 = vmatprep.subr.mxu0 0.0
        %738 = vmatpush2.msra.mxu0 0.0
        %739 = vmatprep.subr.mxu0 0.0
        %740 = vmatpush2.msra.mxu0 0.0
        %741 = vmatprep.subr.mxu0 0.0
        %742 = vmatpush2.msra.mxu0 0.0
        %743 = vmatprep.subr.mxu0 0.0
        %744 = vmatpush2.msra.mxu0 0.0
        %745 = vmatprep.subr.mxu0 0.0
        %746 = vmatpush2.msra.mxu0 0.0
        %747 = vmatprep.subr.mxu0 0.0
        %748 = vmatpush2.msra.mxu0 0.0
        %749 = vmatprep.subr.mxu0 0.0
        %750 = vmatpush2.msra.mxu0 0.0
        %751 = vmatprep.subr.mxu0 0.0
        %752 = vmatpush2.msra.mxu0 0.0
        %753 = vmatprep.mubr.f32.mxu0 0.0
        %754 = vmatmul.mubr.f32.gmra.mxu0 %v660
        %v755 = vpop.f32.mrf.mxu0
        %v756 = vadd.f32 %v688, %v755
        %v757 = vpop.f32.mrf.mxu0
        %758 = vmatprep.mubr.f32.mxu0 0.0
        %759 = vmatmul.mubr.f32.gmra.mxu0 %v661
        %v760 = vpop.f32.mrf.mxu0
        %v761 = vadd.f32 %v688, %v760
        %v762 = vpop.f32.mrf.mxu0
        %763 = vmatprep.mubr.f32.mxu0 0.0
        %764 = vmatmul.mubr.f32.gmra.mxu0 %v662
        %v765 = vpop.f32.mrf.mxu0
        %v766 = vadd.f32 %v688, %v765
        %v767 = vpop.f32.mrf.mxu0
        %768 = vmatprep.mubr.f32.mxu0 0.0
        %769 = vmatmul.mubr.f32.gmra.mxu0 %v663
        %v770 = vpop.f32.mrf.mxu0
        %v771 = vadd.f32 %v688, %v770
        %v772 = vpop.f32.mrf.mxu0
        %773 = vmatprep.mubr.f32.mxu0 0.0
        %774 = vmatmul.mubr.f32.gmra.mxu0 %v664
        %v775 = vpop.f32.mrf.mxu0
        %v776 = vadd.f32 %v688, %v775
        %v777 = vpop.f32.mrf.mxu0
        %778 = vmatprep.mubr.f32.mxu0 0.0
        %779 = vmatmul.mubr.f32.gmra.mxu0 %v665
        %v780 = vpop.f32.mrf.mxu0
        %v781 = vadd.f32 %v688, %v780
        %v782 = vpop.f32.mrf.mxu0
        %783 = vmatprep.mubr.f32.mxu0 0.0
        %784 = vmatmul.mubr.f32.gmra.mxu0 %v666
        %v785 = vpop.f32.mrf.mxu0
        %v786 = vadd.f32 %v688, %v785
        %v787 = vpop.f32.mrf.mxu0
        %788 = vmatprep.mubr.f32.mxu0 0.0
        %789 = vmatmul.mubr.f32.gmra.mxu0 %v667
        %v790 = vpop.f32.mrf.mxu0
        %v791 = vadd.f32 %v688, %v790
        %v792 = vpop.f32.mrf.mxu0
        %793 = vdwg.mxu0
        %vm794 = vcmp.gt.f32.partialorder %v756, 0.0
        %vm795 = vcmp.gt.f32.partialorder %v761, 0.0
        %vm796 = vcmp.gt.f32.partialorder %v766, 0.0
        %vm797 = vcmp.gt.f32.partialorder %v771, 0.0
        %vm798 = vcmp.gt.f32.partialorder %v776, 0.0
        %vm799 = vcmp.gt.f32.partialorder %v781, 0.0
        %vm800 = vcmp.gt.f32.partialorder %v786, 0.0
        %vm801 = vcmp.gt.f32.partialorder %v791, 0.0
        %v802 = vmul.f32 %v756, 0.2
        %v803 = vmul.f32 %v761, 0.2
        %v804 = vmul.f32 %v766, 0.2
        %v805 = vmul.f32 %v771, 0.2
        %v806 = vmul.f32 %v776, 0.2
        %v807 = vmul.f32 %v781, 0.2
        %v808 = vmul.f32 %v786, 0.2
        %v809 = vmul.f32 %v791, 0.2
        %v810 = vsel %vm794, %v756, %v802
        %v811 = vsel %vm795, %v761, %v803
        %v812 = vsel %vm796, %v766, %v804
        %v813 = vsel %vm797, %v771, %v805
        %v814 = vsel %vm798, %v776, %v806
        %v815 = vsel %vm799, %v781, %v807
        %v816 = vsel %vm800, %v786, %v808
        %v817 = vsel %vm801, %v791, %v809
        %v818 = vld [vmem:[%s1 + $0x7] sm:$0x1]
        %v819 = vld [vmem:[%s1 + $0x8] sm:$0x1]
        %vm820 = vcmask 523264
        %v821 = vsel %vm820, %v810, 0.0
        %822 = vadd.xlane.f32.xlu0 %v821
        %v823 = vpop.xlane.xlu0 %822
        %v824 = vsel %vm820, %v811, 0.0
        %825 = vadd.xlane.f32.xlu0 %v824
        %v826 = vpop.xlane.xlu0 %825
        %v827 = vsel %vm820, %v812, 0.0
        %828 = vadd.xlane.f32.xlu0 %v827
        %v829 = vpop.xlane.xlu0 %828
        %v830 = vsel %vm820, %v813, 0.0
        %831 = vadd.xlane.f32.xlu0 %v830
        %v832 = vpop.xlane.xlu0 %831
        %v833 = vsel %vm820, %v814, 0.0
        %834 = vadd.xlane.f32.xlu0 %v833
        %v835 = vpop.xlane.xlu0 %834
        %v836 = vsel %vm820, %v815, 0.0
        %837 = vadd.xlane.f32.xlu0 %v836
        %v838 = vpop.xlane.xlu0 %837
        %v839 = vsel %vm820, %v816, 0.0
        %840 = vadd.xlane.f32.xlu0 %v839
        %v841 = vpop.xlane.xlu0 %840
        %v842 = vsel %vm820, %v817, 0.0
        %843 = vadd.xlane.f32.xlu0 %v842
        %v844 = vpop.xlane.xlu0 %843
        %v845 = vmul.f32 %v823, 0.015625
        %v846 = vmul.f32 %v826, 0.015625
        %v847 = vmul.f32 %v829, 0.015625
        %v848 = vmul.f32 %v832, 0.015625
        %v849 = vmul.f32 %v835, 0.015625
        %v850 = vmul.f32 %v838, 0.015625
        %v851 = vmul.f32 %v841, 0.015625
        %v852 = vmul.f32 %v844, 0.015625
        %v853 = vmul.f32 %v810, %v810
        %v854 = vmul.f32 %v811, %v811
        %v855 = vmul.f32 %v812, %v812
        %v856 = vmul.f32 %v813, %v813
        %v857 = vmul.f32 %v814, %v814
        %v858 = vmul.f32 %v815, %v815
        %v859 = vmul.f32 %v816, %v816
        %v860 = vmul.f32 %v817, %v817
        %v861 = vsel %vm820, %v853, 0.0
        %862 = vadd.xlane.f32.xlu0 %v861
        %v863 = vpop.xlane.xlu0 %862
        %v864 = vsel %vm820, %v854, 0.0
        %865 = vadd.xlane.f32.xlu0 %v864
        %v866 = vpop.xlane.xlu0 %865
        %v867 = vsel %vm820, %v855, 0.0
        %868 = vadd.xlane.f32.xlu0 %v867
        %v869 = vpop.xlane.xlu0 %868
        %v870 = vsel %vm820, %v856, 0.0
        %871 = vadd.xlane.f32.xlu0 %v870
        %v872 = vpop.xlane.xlu0 %871
        %v873 = vsel %vm820, %v857, 0.0
        %874 = vadd.xlane.f32.xlu0 %v873
        %v875 = vpop.xlane.xlu0 %874
        %v876 = vsel %vm820, %v858, 0.0
        %877 = vadd.xlane.f32.xlu0 %v876
        %v878 = vpop.xlane.xlu0 %877
        %v879 = vsel %vm820, %v859, 0.0
        %880 = vadd.xlane.f32.xlu0 %v879
        %v881 = vpop.xlane.xlu0 %880
        %v882 = vsel %vm820, %v860, 0.0
        %883 = vadd.xlane.f32.xlu0 %v882
        %v884 = vpop.xlane.xlu0 %883
        %v885 = vmul.f32 %v863, 0.015625
        %v886 = vmul.f32 %v866, 0.015625
        %v887 = vmul.f32 %v869, 0.015625
        %v888 = vmul.f32 %v872, 0.015625
        %v889 = vmul.f32 %v875, 0.015625
        %v890 = vmul.f32 %v878, 0.015625
        %v891 = vmul.f32 %v881, 0.015625
        %v892 = vmul.f32 %v884, 0.015625
        %v893 = vmul.f32 %v845, %v845
        %v894 = vmul.f32 %v846, %v846
        %v895 = vmul.f32 %v847, %v847
        %v896 = vmul.f32 %v848, %v848
        %v897 = vmul.f32 %v849, %v849
        %v898 = vmul.f32 %v850, %v850
        %v899 = vmul.f32 %v851, %v851
        %v900 = vmul.f32 %v852, %v852
        %v901 = vsub.f32 %v885, %v893
        %v902 = vsub.f32 %v886, %v894
        %v903 = vsub.f32 %v887, %v895
        %v904 = vsub.f32 %v888, %v896
        %v905 = vsub.f32 %v889, %v897
        %v906 = vsub.f32 %v890, %v898
        %v907 = vsub.f32 %v891, %v899
        %v908 = vsub.f32 %v892, %v900
        %v909 = vsub.f32 %v810, %v845
        %v910 = vsub.f32 %v811, %v846
        %v911 = vsub.f32 %v812, %v847
        %v912 = vsub.f32 %v813, %v848
        %v913 = vsub.f32 %v814, %v849
        %v914 = vsub.f32 %v815, %v850
        %v915 = vsub.f32 %v816, %v851
        %v916 = vsub.f32 %v817, %v852
        %v917 = vadd.f32 %v901, 1e-05
        %v918 = vadd.f32 %v902, 1e-05
        %v919 = vadd.f32 %v903, 1e-05
        %v920 = vadd.f32 %v904, 1e-05
        %v921 = vadd.f32 %v905, 1e-05
        %v922 = vadd.f32 %v906, 1e-05
        %v923 = vadd.f32 %v907, 1e-05
        %v924 = vadd.f32 %v908, 1e-05
        %v925 = vrsqrt.pop %v917
        %v926 = vrsqrt.pop %v918
        %v927 = vrsqrt.pop %v919
        %v928 = vrsqrt.pop %v920
        %v929 = vrsqrt.pop %v921
        %v930 = vrsqrt.pop %v922
        %v931 = vrsqrt.pop %v923
        %v932 = vrsqrt.pop %v924
        %v933 = vmul.f32 %v909, %v925
        %v934 = vmul.f32 %v910, %v926
        %v935 = vmul.f32 %v911, %v927
        %v936 = vmul.f32 %v912, %v928
        %v937 = vmul.f32 %v913, %v929
        %v938 = vmul.f32 %v914, %v930
        %v939 = vmul.f32 %v915, %v931
        %v940 = vmul.f32 %v916, %v932
        %v941 = vlaneseq
        %v942 = vshrl.u32 %v941, 7
        %v943 = vsub.s32 0, %v942
        %v944 = vrot.slane %v818, %v943
        %v945 = vmul.f32 %v933, %v944
        %v946 = vmul.f32 %v934, %v944
        %v947 = vmul.f32 %v935, %v944
        %v948 = vmul.f32 %v936, %v944
        %v949 = vmul.f32 %v937, %v944
        %v950 = vmul.f32 %v938, %v944
        %v951 = vmul.f32 %v939, %v944
        %v952 = vmul.f32 %v940, %v944
        %v953 = vlaneseq
        %v954 = vshrl.u32 %v953, 7
        %v955 = vsub.s32 0, %v954
        %v956 = vrot.slane %v819, %v955
        %v957 = vadd.f32 %v945, %v956
        %v958 = vadd.f32 %v946, %v956
        %v959 = vadd.f32 %v947, %v956
        %v960 = vadd.f32 %v948, %v956
        %v961 = vadd.f32 %v949, %v956
        %v962 = vadd.f32 %v950, %v956
        %v963 = vadd.f32 %v951, %v956
        %v964 = vadd.f32 %v952, %v956
        %v965 = vld [vmem:[%s3] sm:$0xff]
        %v966 = vld [vmem:[%s3 + $0x8] sm:$0xff]
        %v967 = vld [vmem:[%s3 + $0x10] sm:$0xff]
        %v968 = vld [vmem:[%s3 + $0x18] sm:$0xff]
        %v969 = vld [vmem:[%s3 + $0x20] sm:$0xff]
        %v970 = vld [vmem:[%s3 + $0x28] sm:$0xff]
        %v971 = vld [vmem:[%s3 + $0x30] sm:$0xff]
        %v972 = vld [vmem:[%s3 + $0x38] sm:$0xff]
        %v973 = vld [vmem:[%s1 + $0x9] sm:$0x1]
        %v974 = vlaneseq
        %v975 = vshrl.u32 %v974, 7
        %v976 = vsub.s32 0, %v975
        %v977 = vrot.slane %v973, %v976
        %v979 = vsel %vm820, %v957, 0
        %v982 = vsel %vm820, %v958, 0
        %v985 = vsel %vm820, %v959, 0
        %v988 = vsel %vm820, %v960, 0
        %v991 = vsel %vm820, %v961, 0
        %v994 = vsel %vm820, %v962, 0
        %v997 = vsel %vm820, %v963, 0
        %v1000 = vsel %vm820, %v964, 0
        %1002 = vmatprep.subr.mxu0 0.0
        %1003 = vmatpush1.msra.mxu0 0.0
        %1004 = vmatprep.subr.mxu0 0.0
        %1005 = vmatpush1.msra.mxu0 0.0
        %1006 = vmatprep.subr.mxu0 0.0
        %1007 = vmatpush1.msra.mxu0 0.0
        %1008 = vmatprep.subr.mxu0 0.0
        %1009 = vmatpush1.msra.mxu0 0.0
        %1010 = vmatprep.subr.mxu0 0.0
        %1011 = vmatpush1.msra.mxu0 0.0
        %1012 = vmatprep.subr.mxu0 0.0
        %1013 = vmatpush1.msra.mxu0 0.0
        %1014 = vmatprep.subr.mxu0 0.0
        %1015 = vmatpush1.msra.mxu0 0.0
        %1016 = vmatprep.subr.mxu0 0.0
        %1017 = vmatpush1.msra.mxu0 0.0
        %1018 = vmatprep.subr.mxu0 0.0
        %1019 = vmatpush1.msra.mxu0 %v972
        %1020 = vmatprep.subr.mxu0 0.0
        %1021 = vmatpush1.msra.mxu0 %v971
        %1022 = vmatprep.subr.mxu0 0.0
        %1023 = vmatpush1.msra.mxu0 %v970
        %1024 = vmatprep.subr.mxu0 0.0
        %1025 = vmatpush1.msra.mxu0 %v969
        %1026 = vmatprep.subr.mxu0 0.0
        %1027 = vmatpush1.msra.mxu0 %v968
        %1028 = vmatprep.subr.mxu0 0.0
        %1029 = vmatpush1.msra.mxu0 %v967
        %1030 = vmatprep.subr.mxu0 0.0
        %1031 = vmatpush1.msra.mxu0 %v966
        %1032 = vmatprep.subr.mxu0 0.0
        %1033 = vmatpush1.msra.mxu0 %v965
        %1034 = vmatprep.subr.mxu0 0.0
        %1035 = vmatpush2.msra.mxu0 0.0
        %1036 = vmatprep.subr.mxu0 0.0
        %1037 = vmatpush2.msra.mxu0 0.0
        %1038 = vmatprep.subr.mxu0 0.0
        %1039 = vmatpush2.msra.mxu0 0.0
        %1040 = vmatprep.subr.mxu0 0.0
        %1041 = vmatpush2.msra.mxu0 0.0
        %1042 = vmatprep.subr.mxu0 0.0
        %1043 = vmatpush2.msra.mxu0 0.0
        %1044 = vmatprep.subr.mxu0 0.0
        %1045 = vmatpush2.msra.mxu0 0.0
        %1046 = vmatprep.subr.mxu0 0.0
        %1047 = vmatpush2.msra.mxu0 0.0
        %1048 = vmatprep.subr.mxu0 0.0
        %1049 = vmatpush2.msra.mxu0 0.0
        %1050 = vmatprep.subr.mxu0 0.0
        %1051 = vmatpush2.msra.mxu0 0.0
        %1052 = vmatprep.subr.mxu0 0.0
        %1053 = vmatpush2.msra.mxu0 0.0
        %1054 = vmatprep.subr.mxu0 0.0
        %1055 = vmatpush2.msra.mxu0 0.0
        %1056 = vmatprep.subr.mxu0 0.0
        %1057 = vmatpush2.msra.mxu0 0.0
        %1058 = vmatprep.subr.mxu0 0.0
        %1059 = vmatpush2.msra.mxu0 0.0
        %1060 = vmatprep.subr.mxu0 0.0
        %1061 = vmatpush2.msra.mxu0 0.0
        %1062 = vmatprep.subr.mxu0 0.0
        %1063 = vmatpush2.msra.mxu0 0.0
        %1064 = vmatprep.subr.mxu0 0.0
        %1065 = vmatpush2.msra.mxu0 0.0
        %1066 = vmatprep.mubr.f32.mxu0 0.0
        %1067 = vmatmul.mubr.f32.gmra.mxu0 %v979
        %v1068 = vpop.f32.mrf.mxu0
        %v1069 = vadd.f32 %v977, %v1068
        %v1070 = vpop.f32.mrf.mxu0
        %1071 = vmatprep.mubr.f32.mxu0 0.0
        %1072 = vmatmul.mubr.f32.gmra.mxu0 %v982
        %v1073 = vpop.f32.mrf.mxu0
        %v1074 = vadd.f32 %v977, %v1073
        %v1075 = vpop.f32.mrf.mxu0
        %1076 = vmatprep.mubr.f32.mxu0 0.0
        %1077 = vmatmul.mubr.f32.gmra.mxu0 %v985
        %v1078 = vpop.f32.mrf.mxu0
        %v1079 = vadd.f32 %v977, %v1078
        %v1080 = vpop.f32.mrf.mxu0
        %1081 = vmatprep.mubr.f32.mxu0 0.0
        %1082 = vmatmul.mubr.f32.gmra.mxu0 %v988
        %v1083 = vpop.f32.mrf.mxu0
        %v1084 = vadd.f32 %v977, %v1083
        %v1085 = vpop.f32.mrf.mxu0
        %1086 = vmatprep.mubr.f32.mxu0 0.0
        %1087 = vmatmul.mubr.f32.gmra.mxu0 %v991
        %v1088 = vpop.f32.mrf.mxu0
        %v1089 = vadd.f32 %v977, %v1088
        %v1090 = vpop.f32.mrf.mxu0
        %1091 = vmatprep.mubr.f32.mxu0 0.0
        %1092 = vmatmul.mubr.f32.gmra.mxu0 %v994
        %v1093 = vpop.f32.mrf.mxu0
        %v1094 = vadd.f32 %v977, %v1093
        %v1095 = vpop.f32.mrf.mxu0
        %1096 = vmatprep.mubr.f32.mxu0 0.0
        %1097 = vmatmul.mubr.f32.gmra.mxu0 %v997
        %v1098 = vpop.f32.mrf.mxu0
        %v1099 = vadd.f32 %v977, %v1098
        %v1100 = vpop.f32.mrf.mxu0
        %1101 = vmatprep.mubr.f32.mxu0 0.0
        %1102 = vmatmul.mubr.f32.gmra.mxu0 %v1000
        %v1103 = vpop.f32.mrf.mxu0
        %v1104 = vadd.f32 %v977, %v1103
        %v1105 = vpop.f32.mrf.mxu0
        %1106 = vdwg.mxu0
        %vm1107 = vcmp.gt.f32.partialorder %v1069, 0.0
        %vm1108 = vcmp.gt.f32.partialorder %v1074, 0.0
        %vm1109 = vcmp.gt.f32.partialorder %v1079, 0.0
        %vm1110 = vcmp.gt.f32.partialorder %v1084, 0.0
        %vm1111 = vcmp.gt.f32.partialorder %v1089, 0.0
        %vm1112 = vcmp.gt.f32.partialorder %v1094, 0.0
        %vm1113 = vcmp.gt.f32.partialorder %v1099, 0.0
        %vm1114 = vcmp.gt.f32.partialorder %v1104, 0.0
        %v1115 = vmul.f32 %v1069, 0.2
        %v1116 = vmul.f32 %v1074, 0.2
        %v1117 = vmul.f32 %v1079, 0.2
        %v1118 = vmul.f32 %v1084, 0.2
        %v1119 = vmul.f32 %v1089, 0.2
        %v1120 = vmul.f32 %v1094, 0.2
        %v1121 = vmul.f32 %v1099, 0.2
        %v1122 = vmul.f32 %v1104, 0.2
        %v1123 = vsel %vm1107, %v1069, %v1115
        %v1124 = vsel %vm1108, %v1074, %v1116
        %v1125 = vsel %vm1109, %v1079, %v1117
        %v1126 = vsel %vm1110, %v1084, %v1118
        %v1127 = vsel %vm1111, %v1089, %v1119
        %v1128 = vsel %vm1112, %v1094, %v1120
        %v1129 = vsel %vm1113, %v1099, %v1121
        %v1130 = vsel %vm1114, %v1104, %v1122
        %v1131 = vld [vmem:[%s1 + $0xa] sm:$0x1]
        %v1132 = vld [vmem:[%s1 + $0xb] sm:$0x1]
        %vm1133 = vcmask 261120
        %v1134 = vsel %vm1133, %v1123, 0.0
        %1135 = vadd.xlane.f32.xlu0 %v1134
        %v1136 = vpop.xlane.xlu0 %1135
        %v1137 = vsel %vm1133, %v1124, 0.0
        %1138 = vadd.xlane.f32.xlu0 %v1137
        %v1139 = vpop.xlane.xlu0 %1138
        %v1140 = vsel %vm1133, %v1125, 0.0
        %1141 = vadd.xlane.f32.xlu0 %v1140
        %v1142 = vpop.xlane.xlu0 %1141
        %v1143 = vsel %vm1133, %v1126, 0.0
        %1144 = vadd.xlane.f32.xlu0 %v1143
        %v1145 = vpop.xlane.xlu0 %1144
        %v1146 = vsel %vm1133, %v1127, 0.0
        %1147 = vadd.xlane.f32.xlu0 %v1146
        %v1148 = vpop.xlane.xlu0 %1147
        %v1149 = vsel %vm1133, %v1128, 0.0
        %1150 = vadd.xlane.f32.xlu0 %v1149
        %v1151 = vpop.xlane.xlu0 %1150
        %v1152 = vsel %vm1133, %v1129, 0.0
        %1153 = vadd.xlane.f32.xlu0 %v1152
        %v1154 = vpop.xlane.xlu0 %1153
        %v1155 = vsel %vm1133, %v1130, 0.0
        %1156 = vadd.xlane.f32.xlu0 %v1155
        %v1157 = vpop.xlane.xlu0 %1156
        %v1158 = vmul.f32 %v1136, 0.03125
        %v1159 = vmul.f32 %v1139, 0.03125
        %v1160 = vmul.f32 %v1142, 0.03125
        %v1161 = vmul.f32 %v1145, 0.03125
        %v1162 = vmul.f32 %v1148, 0.03125
        %v1163 = vmul.f32 %v1151, 0.03125
        %v1164 = vmul.f32 %v1154, 0.03125
        %v1165 = vmul.f32 %v1157, 0.03125
        %v1166 = vmul.f32 %v1123, %v1123
        %v1167 = vmul.f32 %v1124, %v1124
        %v1168 = vmul.f32 %v1125, %v1125
        %v1169 = vmul.f32 %v1126, %v1126
        %v1170 = vmul.f32 %v1127, %v1127
        %v1171 = vmul.f32 %v1128, %v1128
        %v1172 = vmul.f32 %v1129, %v1129
        %v1173 = vmul.f32 %v1130, %v1130
        %v1174 = vsel %vm1133, %v1166, 0.0
        %1175 = vadd.xlane.f32.xlu0 %v1174
        %v1176 = vpop.xlane.xlu0 %1175
        %v1177 = vsel %vm1133, %v1167, 0.0
        %1178 = vadd.xlane.f32.xlu0 %v1177
        %v1179 = vpop.xlane.xlu0 %1178
        %v1180 = vsel %vm1133, %v1168, 0.0
        %1181 = vadd.xlane.f32.xlu0 %v1180
        %v1182 = vpop.xlane.xlu0 %1181
        %v1183 = vsel %vm1133, %v1169, 0.0
        %1184 = vadd.xlane.f32.xlu0 %v1183
        %v1185 = vpop.xlane.xlu0 %1184
        %v1186 = vsel %vm1133, %v1170, 0.0
        %1187 = vadd.xlane.f32.xlu0 %v1186
        %v1188 = vpop.xlane.xlu0 %1187
        %v1189 = vsel %vm1133, %v1171, 0.0
        %1190 = vadd.xlane.f32.xlu0 %v1189
        %v1191 = vpop.xlane.xlu0 %1190
        %v1192 = vsel %vm1133, %v1172, 0.0
        %1193 = vadd.xlane.f32.xlu0 %v1192
        %v1194 = vpop.xlane.xlu0 %1193
        %v1195 = vsel %vm1133, %v1173, 0.0
        %1196 = vadd.xlane.f32.xlu0 %v1195
        %v1197 = vpop.xlane.xlu0 %1196
        %v1198 = vmul.f32 %v1176, 0.03125
        %v1199 = vmul.f32 %v1179, 0.03125
        %v1200 = vmul.f32 %v1182, 0.03125
        %v1201 = vmul.f32 %v1185, 0.03125
        %v1202 = vmul.f32 %v1188, 0.03125
        %v1203 = vmul.f32 %v1191, 0.03125
        %v1204 = vmul.f32 %v1194, 0.03125
        %v1205 = vmul.f32 %v1197, 0.03125
        %v1206 = vmul.f32 %v1158, %v1158
        %v1207 = vmul.f32 %v1159, %v1159
        %v1208 = vmul.f32 %v1160, %v1160
        %v1209 = vmul.f32 %v1161, %v1161
        %v1210 = vmul.f32 %v1162, %v1162
        %v1211 = vmul.f32 %v1163, %v1163
        %v1212 = vmul.f32 %v1164, %v1164
        %v1213 = vmul.f32 %v1165, %v1165
        %v1214 = vsub.f32 %v1198, %v1206
        %v1215 = vsub.f32 %v1199, %v1207
        %v1216 = vsub.f32 %v1200, %v1208
        %v1217 = vsub.f32 %v1201, %v1209
        %v1218 = vsub.f32 %v1202, %v1210
        %v1219 = vsub.f32 %v1203, %v1211
        %v1220 = vsub.f32 %v1204, %v1212
        %v1221 = vsub.f32 %v1205, %v1213
        %v1222 = vsub.f32 %v1123, %v1158
        %v1223 = vsub.f32 %v1124, %v1159
        %v1224 = vsub.f32 %v1125, %v1160
        %v1225 = vsub.f32 %v1126, %v1161
        %v1226 = vsub.f32 %v1127, %v1162
        %v1227 = vsub.f32 %v1128, %v1163
        %v1228 = vsub.f32 %v1129, %v1164
        %v1229 = vsub.f32 %v1130, %v1165
        %v1230 = vadd.f32 %v1214, 1e-05
        %v1231 = vadd.f32 %v1215, 1e-05
        %v1232 = vadd.f32 %v1216, 1e-05
        %v1233 = vadd.f32 %v1217, 1e-05
        %v1234 = vadd.f32 %v1218, 1e-05
        %v1235 = vadd.f32 %v1219, 1e-05
        %v1236 = vadd.f32 %v1220, 1e-05
        %v1237 = vadd.f32 %v1221, 1e-05
        %v1238 = vrsqrt.pop %v1230
        %v1239 = vrsqrt.pop %v1231
        %v1240 = vrsqrt.pop %v1232
        %v1241 = vrsqrt.pop %v1233
        %v1242 = vrsqrt.pop %v1234
        %v1243 = vrsqrt.pop %v1235
        %v1244 = vrsqrt.pop %v1236
        %v1245 = vrsqrt.pop %v1237
        %v1246 = vmul.f32 %v1222, %v1238
        %v1247 = vmul.f32 %v1223, %v1239
        %v1248 = vmul.f32 %v1224, %v1240
        %v1249 = vmul.f32 %v1225, %v1241
        %v1250 = vmul.f32 %v1226, %v1242
        %v1251 = vmul.f32 %v1227, %v1243
        %v1252 = vmul.f32 %v1228, %v1244
        %v1253 = vmul.f32 %v1229, %v1245
        %v1254 = vlaneseq
        %v1255 = vshrl.u32 %v1254, 7
        %v1256 = vsub.s32 0, %v1255
        %v1257 = vrot.slane %v1131, %v1256
        %v1258 = vmul.f32 %v1246, %v1257
        %v1259 = vmul.f32 %v1247, %v1257
        %v1260 = vmul.f32 %v1248, %v1257
        %v1261 = vmul.f32 %v1249, %v1257
        %v1262 = vmul.f32 %v1250, %v1257
        %v1263 = vmul.f32 %v1251, %v1257
        %v1264 = vmul.f32 %v1252, %v1257
        %v1265 = vmul.f32 %v1253, %v1257
        %v1266 = vlaneseq
        %v1267 = vshrl.u32 %v1266, 7
        %v1268 = vsub.s32 0, %v1267
        %v1269 = vrot.slane %v1132, %v1268
        %v1270 = vadd.f32 %v1258, %v1269
        %v1271 = vadd.f32 %v1259, %v1269
        %v1272 = vadd.f32 %v1260, %v1269
        %v1273 = vadd.f32 %v1261, %v1269
        %v1274 = vadd.f32 %v1262, %v1269
        %v1275 = vadd.f32 %v1263, %v1269
        %v1276 = vadd.f32 %v1264, %v1269
        %v1277 = vadd.f32 %v1265, %v1269
        %v1278 = vld [vmem:[%s4] sm:$0xff]
        %v1279 = vld [vmem:[%s4 + $0x8] sm:$0xff]
        %v1280 = vld [vmem:[%s4 + $0x10] sm:$0xff]
        %v1281 = vld [vmem:[%s4 + $0x18] sm:$0xff]
        %v1282 = vld [vmem:[%s1 + $0xc] sm:$0x1]
        %v1283 = vlaneseq
        %v1284 = vshrl.u32 %v1283, 7
        %v1285 = vsub.s32 0, %v1284
        %v1286 = vrot.slane %v1282, %v1285
        %v1288 = vsel %vm1133, %v1270, 0
        %v1291 = vsel %vm1133, %v1271, 0
        %v1294 = vsel %vm1133, %v1272, 0
        %v1297 = vsel %vm1133, %v1273, 0
        %v1300 = vsel %vm1133, %v1274, 0
        %v1303 = vsel %vm1133, %v1275, 0
        %v1306 = vsel %vm1133, %v1276, 0
        %v1309 = vsel %vm1133, %v1277, 0
        %1311 = vmatprep.subr.mxu0 0.0
        %1312 = vmatpush1.msra.mxu0 0.0
        %1313 = vmatprep.subr.mxu0 0.0
        %1314 = vmatpush1.msra.mxu0 0.0
        %1315 = vmatprep.subr.mxu0 0.0
        %1316 = vmatpush1.msra.mxu0 0.0
        %1317 = vmatprep.subr.mxu0 0.0
        %1318 = vmatpush1.msra.mxu0 0.0
        %1319 = vmatprep.subr.mxu0 0.0
        %1320 = vmatpush1.msra.mxu0 0.0
        %1321 = vmatprep.subr.mxu0 0.0
        %1322 = vmatpush1.msra.mxu0 0.0
        %1323 = vmatprep.subr.mxu0 0.0
        %1324 = vmatpush1.msra.mxu0 0.0
        %1325 = vmatprep.subr.mxu0 0.0
        %1326 = vmatpush1.msra.mxu0 0.0
        %1327 = vmatprep.subr.mxu0 0.0
        %1328 = vmatpush1.msra.mxu0 0.0
        %1329 = vmatprep.subr.mxu0 0.0
        %1330 = vmatpush1.msra.mxu0 0.0
        %1331 = vmatprep.subr.mxu0 0.0
        %1332 = vmatpush1.msra.mxu0 0.0
        %1333 = vmatprep.subr.mxu0 0.0
        %1334 = vmatpush1.msra.mxu0 0.0
        %1335 = vmatprep.subr.mxu0 0.0
        %1336 = vmatpush1.msra.mxu0 %v1281
        %1337 = vmatprep.subr.mxu0 0.0
        %1338 = vmatpush1.msra.mxu0 %v1280
        %1339 = vmatprep.subr.mxu0 0.0
        %1340 = vmatpush1.msra.mxu0 %v1279
        %1341 = vmatprep.subr.mxu0 0.0
        %1342 = vmatpush1.msra.mxu0 %v1278
        %1343 = vmatprep.subr.mxu0 0.0
        %1344 = vmatpush2.msra.mxu0 0.0
        %1345 = vmatprep.subr.mxu0 0.0
        %1346 = vmatpush2.msra.mxu0 0.0
        %1347 = vmatprep.subr.mxu0 0.0
        %1348 = vmatpush2.msra.mxu0 0.0
        %1349 = vmatprep.subr.mxu0 0.0
        %1350 = vmatpush2.msra.mxu0 0.0
        %1351 = vmatprep.subr.mxu0 0.0
        %1352 = vmatpush2.msra.mxu0 0.0
        %1353 = vmatprep.subr.mxu0 0.0
        %1354 = vmatpush2.msra.mxu0 0.0
        %1355 = vmatprep.subr.mxu0 0.0
        %1356 = vmatpush2.msra.mxu0 0.0
        %1357 = vmatprep.subr.mxu0 0.0
        %1358 = vmatpush2.msra.mxu0 0.0
        %1359 = vmatprep.subr.mxu0 0.0
        %1360 = vmatpush2.msra.mxu0 0.0
        %1361 = vmatprep.subr.mxu0 0.0
        %1362 = vmatpush2.msra.mxu0 0.0
        %1363 = vmatprep.subr.mxu0 0.0
        %1364 = vmatpush2.msra.mxu0 0.0
        %1365 = vmatprep.subr.mxu0 0.0
        %1366 = vmatpush2.msra.mxu0 0.0
        %1367 = vmatprep.subr.mxu0 0.0
        %1368 = vmatpush2.msra.mxu0 0.0
        %1369 = vmatprep.subr.mxu0 0.0
        %1370 = vmatpush2.msra.mxu0 0.0
        %1371 = vmatprep.subr.mxu0 0.0
        %1372 = vmatpush2.msra.mxu0 0.0
        %1373 = vmatprep.subr.mxu0 0.0
        %1374 = vmatpush2.msra.mxu0 0.0
        %1375 = vmatprep.mubr.f32.mxu0 0.0
        %1376 = vmatmul.mubr.f32.gmra.mxu0 %v1288
        %v1377 = vpop.f32.mrf.mxu0
        %v1378 = vadd.f32 %v1286, %v1377
        %v1379 = vpop.f32.mrf.mxu0
        %1380 = vmatprep.mubr.f32.mxu0 0.0
        %1381 = vmatmul.mubr.f32.gmra.mxu0 %v1291
        %v1382 = vpop.f32.mrf.mxu0
        %v1383 = vadd.f32 %v1286, %v1382
        %v1384 = vpop.f32.mrf.mxu0
        %1385 = vmatprep.mubr.f32.mxu0 0.0
        %1386 = vmatmul.mubr.f32.gmra.mxu0 %v1294
        %v1387 = vpop.f32.mrf.mxu0
        %v1388 = vadd.f32 %v1286, %v1387
        %v1389 = vpop.f32.mrf.mxu0
        %1390 = vmatprep.mubr.f32.mxu0 0.0
        %1391 = vmatmul.mubr.f32.gmra.mxu0 %v1297
        %v1392 = vpop.f32.mrf.mxu0
        %v1393 = vadd.f32 %v1286, %v1392
        %v1394 = vpop.f32.mrf.mxu0
        %1395 = vmatprep.mubr.f32.mxu0 0.0
        %1396 = vmatmul.mubr.f32.gmra.mxu0 %v1300
        %v1397 = vpop.f32.mrf.mxu0
        %v1398 = vadd.f32 %v1286, %v1397
        %v1399 = vpop.f32.mrf.mxu0
        %1400 = vmatprep.mubr.f32.mxu0 0.0
        %1401 = vmatmul.mubr.f32.gmra.mxu0 %v1303
        %v1402 = vpop.f32.mrf.mxu0
        %v1403 = vadd.f32 %v1286, %v1402
        %v1404 = vpop.f32.mrf.mxu0
        %1405 = vmatprep.mubr.f32.mxu0 0.0
        %1406 = vmatmul.mubr.f32.gmra.mxu0 %v1306
        %v1407 = vpop.f32.mrf.mxu0
        %v1408 = vadd.f32 %v1286, %v1407
        %v1409 = vpop.f32.mrf.mxu0
        %1410 = vmatprep.mubr.f32.mxu0 0.0
        %1411 = vmatmul.mubr.f32.gmra.mxu0 %v1309
        %v1412 = vpop.f32.mrf.mxu0
        %v1413 = vadd.f32 %v1286, %v1412
        %v1414 = vpop.f32.mrf.mxu0
        %1415 = vdwg.mxu0
        %v1416 = vld [vmem:[%s5] sm:$0xff]
        %v1417 = vld [vmem:[%s5 + $0x8] sm:$0xff]
        %v1418 = vld [vmem:[%s5 + $0x10] sm:$0xff]
        %v1419 = vld [vmem:[%s5 + $0x18] sm:$0xff]
        %v1420 = vld [vmem:[%s1 + $0xd] sm:$0x1]
        %v1421 = vlaneseq
        %v1422 = vshrl.u32 %v1421, 7
        %v1423 = vsub.s32 0, %v1422
        %v1424 = vrot.slane %v1420, %v1423
        %v1426 = vsel %vm1133, %v1378, 0
        %v1429 = vsel %vm1133, %v1383, 0
        %v1432 = vsel %vm1133, %v1388, 0
        %v1435 = vsel %vm1133, %v1393, 0
        %v1438 = vsel %vm1133, %v1398, 0
        %v1441 = vsel %vm1133, %v1403, 0
        %v1444 = vsel %vm1133, %v1408, 0
        %v1447 = vsel %vm1133, %v1413, 0
        %1449 = vmatprep.subr.mxu0 0.0
        %1450 = vmatpush1.msra.mxu0 0.0
        %1451 = vmatprep.subr.mxu0 0.0
        %1452 = vmatpush1.msra.mxu0 0.0
        %1453 = vmatprep.subr.mxu0 0.0
        %1454 = vmatpush1.msra.mxu0 0.0
        %1455 = vmatprep.subr.mxu0 0.0
        %1456 = vmatpush1.msra.mxu0 0.0
        %1457 = vmatprep.subr.mxu0 0.0
        %1458 = vmatpush1.msra.mxu0 0.0
        %1459 = vmatprep.subr.mxu0 0.0
        %1460 = vmatpush1.msra.mxu0 0.0
        %1461 = vmatprep.subr.mxu0 0.0
        %1462 = vmatpush1.msra.mxu0 0.0
        %1463 = vmatprep.subr.mxu0 0.0
        %1464 = vmatpush1.msra.mxu0 0.0
        %1465 = vmatprep.subr.mxu0 0.0
        %1466 = vmatpush1.msra.mxu0 0.0
        %1467 = vmatprep.subr.mxu0 0.0
        %1468 = vmatpush1.msra.mxu0 0.0
        %1469 = vmatprep.subr.mxu0 0.0
        %1470 = vmatpush1.msra.mxu0 0.0
        %1471 = vmatprep.subr.mxu0 0.0
        %1472 = vmatpush1.msra.mxu0 0.0
        %1473 = vmatprep.subr.mxu0 0.0
        %1474 = vmatpush1.msra.mxu0 %v1419
        %1475 = vmatprep.subr.mxu0 0.0
        %1476 = vmatpush1.msra.mxu0 %v1418
        %1477 = vmatprep.subr.mxu0 0.0
        %1478 = vmatpush1.msra.mxu0 %v1417
        %1479 = vmatprep.subr.mxu0 0.0
        %1480 = vmatpush1.msra.mxu0 %v1416
        %1481 = vmatprep.subr.mxu0 0.0
        %1482 = vmatpush2.msra.mxu0 0.0
        %1483 = vmatprep.subr.mxu0 0.0
        %1484 = vmatpush2.msra.mxu0 0.0
        %1485 = vmatprep.subr.mxu0 0.0
        %1486 = vmatpush2.msra.mxu0 0.0
        %1487 = vmatprep.subr.mxu0 0.0
        %1488 = vmatpush2.msra.mxu0 0.0
        %1489 = vmatprep.subr.mxu0 0.0
        %1490 = vmatpush2.msra.mxu0 0.0
        %1491 = vmatprep.subr.mxu0 0.0
        %1492 = vmatpush2.msra.mxu0 0.0
        %1493 = vmatprep.subr.mxu0 0.0
        %1494 = vmatpush2.msra.mxu0 0.0
        %1495 = vmatprep.subr.mxu0 0.0
        %1496 = vmatpush2.msra.mxu0 0.0
        %1497 = vmatprep.subr.mxu0 0.0
        %1498 = vmatpush2.msra.mxu0 0.0
        %1499 = vmatprep.subr.mxu0 0.0
        %1500 = vmatpush2.msra.mxu0 0.0
        %1501 = vmatprep.subr.mxu0 0.0
        %1502 = vmatpush2.msra.mxu0 0.0
        %1503 = vmatprep.subr.mxu0 0.0
        %1504 = vmatpush2.msra.mxu0 0.0
        %1505 = vmatprep.subr.mxu0 0.0
        %1506 = vmatpush2.msra.mxu0 0.0
        %1507 = vmatprep.subr.mxu0 0.0
        %1508 = vmatpush2.msra.mxu0 0.0
        %1509 = vmatprep.subr.mxu0 0.0
        %1510 = vmatpush2.msra.mxu0 0.0
        %1511 = vmatprep.subr.mxu0 0.0
        %1512 = vmatpush2.msra.mxu0 0.0
        %1513 = vmatprep.mubr.f32.mxu0 0.0
        %1514 = vmatmul.mubr.f32.gmra.mxu0 %v1426
        %v1515 = vpop.f32.mrf.mxu0
        %v1516 = vadd.f32 %v1424, %v1515
        %v1517 = vpop.f32.mrf.mxu0
        %1518 = vmatprep.mubr.f32.mxu0 0.0
        %1519 = vmatmul.mubr.f32.gmra.mxu0 %v1429
        %v1520 = vpop.f32.mrf.mxu0
        %v1521 = vadd.f32 %v1424, %v1520
        %v1522 = vpop.f32.mrf.mxu0
        %1523 = vmatprep.mubr.f32.mxu0 0.0
        %1524 = vmatmul.mubr.f32.gmra.mxu0 %v1432
        %v1525 = vpop.f32.mrf.mxu0
        %v1526 = vadd.f32 %v1424, %v1525
        %v1527 = vpop.f32.mrf.mxu0
        %1528 = vmatprep.mubr.f32.mxu0 0.0
        %1529 = vmatmul.mubr.f32.gmra.mxu0 %v1435
        %v1530 = vpop.f32.mrf.mxu0
        %v1531 = vadd.f32 %v1424, %v1530
        %v1532 = vpop.f32.mrf.mxu0
        %1533 = vmatprep.mubr.f32.mxu0 0.0
        %1534 = vmatmul.mubr.f32.gmra.mxu0 %v1438
        %v1535 = vpop.f32.mrf.mxu0
        %v1536 = vadd.f32 %v1424, %v1535
        %v1537 = vpop.f32.mrf.mxu0
        %1538 = vmatprep.mubr.f32.mxu0 0.0
        %1539 = vmatmul.mubr.f32.gmra.mxu0 %v1441
        %v1540 = vpop.f32.mrf.mxu0
        %v1541 = vadd.f32 %v1424, %v1540
        %v1542 = vpop.f32.mrf.mxu0
        %1543 = vmatprep.mubr.f32.mxu0 0.0
        %1544 = vmatmul.mubr.f32.gmra.mxu0 %v1444
        %v1545 = vpop.f32.mrf.mxu0
        %v1546 = vadd.f32 %v1424, %v1545
        %v1547 = vpop.f32.mrf.mxu0
        %1548 = vmatprep.mubr.f32.mxu0 0.0
        %1549 = vmatmul.mubr.f32.gmra.mxu0 %v1447
        %v1550 = vpop.f32.mrf.mxu0
        %v1551 = vadd.f32 %v1424, %v1550
        %v1552 = vpop.f32.mrf.mxu0
        %1553 = vdwg.mxu0
        %vm1554 = vcmp.gt.f32.partialorder %v1516, 0.0
        %vm1555 = vcmp.gt.f32.partialorder %v1521, 0.0
        %vm1556 = vcmp.gt.f32.partialorder %v1526, 0.0
        %vm1557 = vcmp.gt.f32.partialorder %v1531, 0.0
        %vm1558 = vcmp.gt.f32.partialorder %v1536, 0.0
        %vm1559 = vcmp.gt.f32.partialorder %v1541, 0.0
        %vm1560 = vcmp.gt.f32.partialorder %v1546, 0.0
        %vm1561 = vcmp.gt.f32.partialorder %v1551, 0.0
        %v1562 = vmul.f32 %v1516, 0.2
        %v1563 = vmul.f32 %v1521, 0.2
        %v1564 = vmul.f32 %v1526, 0.2
        %v1565 = vmul.f32 %v1531, 0.2
        %v1566 = vmul.f32 %v1536, 0.2
        %v1567 = vmul.f32 %v1541, 0.2
        %v1568 = vmul.f32 %v1546, 0.2
        %v1569 = vmul.f32 %v1551, 0.2
        %v1570 = vsel %vm1554, %v1516, %v1562
        %v1571 = vsel %vm1555, %v1521, %v1563
        %v1572 = vsel %vm1556, %v1526, %v1564
        %v1573 = vsel %vm1557, %v1531, %v1565
        %v1574 = vsel %vm1558, %v1536, %v1566
        %v1575 = vsel %vm1559, %v1541, %v1567
        %v1576 = vsel %vm1560, %v1546, %v1568
        %v1577 = vsel %vm1561, %v1551, %v1569
        %v1578 = vld [vmem:[%s1 + $0xe] sm:$0x1]
        %v1579 = vld [vmem:[%s1 + $0xf] sm:$0x1]
        %v1580 = vsel %vm1133, %v1570, 0.0
        %1581 = vadd.xlane.f32.xlu0 %v1580
        %v1582 = vpop.xlane.xlu0 %1581
        %v1583 = vsel %vm1133, %v1571, 0.0
        %1584 = vadd.xlane.f32.xlu0 %v1583
        %v1585 = vpop.xlane.xlu0 %1584
        %v1586 = vsel %vm1133, %v1572, 0.0
        %1587 = vadd.xlane.f32.xlu0 %v1586
        %v1588 = vpop.xlane.xlu0 %1587
        %v1589 = vsel %vm1133, %v1573, 0.0
        %1590 = vadd.xlane.f32.xlu0 %v1589
        %v1591 = vpop.xlane.xlu0 %1590
        %v1592 = vsel %vm1133, %v1574, 0.0
        %1593 = vadd.xlane.f32.xlu0 %v1592
        %v1594 = vpop.xlane.xlu0 %1593
        %v1595 = vsel %vm1133, %v1575, 0.0
        %1596 = vadd.xlane.f32.xlu0 %v1595
        %v1597 = vpop.xlane.xlu0 %1596
        %v1598 = vsel %vm1133, %v1576, 0.0
        %1599 = vadd.xlane.f32.xlu0 %v1598
        %v1600 = vpop.xlane.xlu0 %1599
        %v1601 = vsel %vm1133, %v1577, 0.0
        %1602 = vadd.xlane.f32.xlu0 %v1601
        %v1603 = vpop.xlane.xlu0 %1602
        %v1604 = vmul.f32 %v1582, 0.03125
        %v1605 = vmul.f32 %v1585, 0.03125
        %v1606 = vmul.f32 %v1588, 0.03125
        %v1607 = vmul.f32 %v1591, 0.03125
        %v1608 = vmul.f32 %v1594, 0.03125
        %v1609 = vmul.f32 %v1597, 0.03125
        %v1610 = vmul.f32 %v1600, 0.03125
        %v1611 = vmul.f32 %v1603, 0.03125
        %v1612 = vmul.f32 %v1570, %v1570
        %v1613 = vmul.f32 %v1571, %v1571
        %v1614 = vmul.f32 %v1572, %v1572
        %v1615 = vmul.f32 %v1573, %v1573
        %v1616 = vmul.f32 %v1574, %v1574
        %v1617 = vmul.f32 %v1575, %v1575
        %v1618 = vmul.f32 %v1576, %v1576
        %v1619 = vmul.f32 %v1577, %v1577
        %v1620 = vsel %vm1133, %v1612, 0.0
        %1621 = vadd.xlane.f32.xlu0 %v1620
        %v1622 = vpop.xlane.xlu0 %1621
        %v1623 = vsel %vm1133, %v1613, 0.0
        %1624 = vadd.xlane.f32.xlu0 %v1623
        %v1625 = vpop.xlane.xlu0 %1624
        %v1626 = vsel %vm1133, %v1614, 0.0
        %1627 = vadd.xlane.f32.xlu0 %v1626
        %v1628 = vpop.xlane.xlu0 %1627
        %v1629 = vsel %vm1133, %v1615, 0.0
        %1630 = vadd.xlane.f32.xlu0 %v1629
        %v1631 = vpop.xlane.xlu0 %1630
        %v1632 = vsel %vm1133, %v1616, 0.0
        %1633 = vadd.xlane.f32.xlu0 %v1632
        %v1634 = vpop.xlane.xlu0 %1633
        %v1635 = vsel %vm1133, %v1617, 0.0
        %1636 = vadd.xlane.f32.xlu0 %v1635
        %v1637 = vpop.xlane.xlu0 %1636
        %v1638 = vsel %vm1133, %v1618, 0.0
        %1639 = vadd.xlane.f32.xlu0 %v1638
        %v1640 = vpop.xlane.xlu0 %1639
        %v1641 = vsel %vm1133, %v1619, 0.0
        %1642 = vadd.xlane.f32.xlu0 %v1641
        %v1643 = vpop.xlane.xlu0 %1642
        %v1644 = vmul.f32 %v1622, 0.03125
        %v1645 = vmul.f32 %v1625, 0.03125
        %v1646 = vmul.f32 %v1628, 0.03125
        %v1647 = vmul.f32 %v1631, 0.03125
        %v1648 = vmul.f32 %v1634, 0.03125
        %v1649 = vmul.f32 %v1637, 0.03125
        %v1650 = vmul.f32 %v1640, 0.03125
        %v1651 = vmul.f32 %v1643, 0.03125
        %v1652 = vmul.f32 %v1604, %v1604
        %v1653 = vmul.f32 %v1605, %v1605
        %v1654 = vmul.f32 %v1606, %v1606
        %v1655 = vmul.f32 %v1607, %v1607
        %v1656 = vmul.f32 %v1608, %v1608
        %v1657 = vmul.f32 %v1609, %v1609
        %v1658 = vmul.f32 %v1610, %v1610
        %v1659 = vmul.f32 %v1611, %v1611
        %v1660 = vsub.f32 %v1644, %v1652
        %v1661 = vsub.f32 %v1645, %v1653
        %v1662 = vsub.f32 %v1646, %v1654
        %v1663 = vsub.f32 %v1647, %v1655
        %v1664 = vsub.f32 %v1648, %v1656
        %v1665 = vsub.f32 %v1649, %v1657
        %v1666 = vsub.f32 %v1650, %v1658
        %v1667 = vsub.f32 %v1651, %v1659
        %v1668 = vsub.f32 %v1570, %v1604
        %v1669 = vsub.f32 %v1571, %v1605
        %v1670 = vsub.f32 %v1572, %v1606
        %v1671 = vsub.f32 %v1573, %v1607
        %v1672 = vsub.f32 %v1574, %v1608
        %v1673 = vsub.f32 %v1575, %v1609
        %v1674 = vsub.f32 %v1576, %v1610
        %v1675 = vsub.f32 %v1577, %v1611
        %v1676 = vadd.f32 %v1660, 1e-05
        %v1677 = vadd.f32 %v1661, 1e-05
        %v1678 = vadd.f32 %v1662, 1e-05
        %v1679 = vadd.f32 %v1663, 1e-05
        %v1680 = vadd.f32 %v1664, 1e-05
        %v1681 = vadd.f32 %v1665, 1e-05
        %v1682 = vadd.f32 %v1666, 1e-05
        %v1683 = vadd.f32 %v1667, 1e-05
        %v1684 = vrsqrt.pop %v1676
        %v1685 = vrsqrt.pop %v1677
        %v1686 = vrsqrt.pop %v1678
        %v1687 = vrsqrt.pop %v1679
        %v1688 = vrsqrt.pop %v1680
        %v1689 = vrsqrt.pop %v1681
        %v1690 = vrsqrt.pop %v1682
        %v1691 = vrsqrt.pop %v1683
        %v1692 = vmul.f32 %v1668, %v1684
        %v1693 = vmul.f32 %v1669, %v1685
        %v1694 = vmul.f32 %v1670, %v1686
        %v1695 = vmul.f32 %v1671, %v1687
        %v1696 = vmul.f32 %v1672, %v1688
        %v1697 = vmul.f32 %v1673, %v1689
        %v1698 = vmul.f32 %v1674, %v1690
        %v1699 = vmul.f32 %v1675, %v1691
        %v1700 = vlaneseq
        %v1701 = vshrl.u32 %v1700, 7
        %v1702 = vsub.s32 0, %v1701
        %v1703 = vrot.slane %v1578, %v1702
        %v1704 = vmul.f32 %v1692, %v1703
        %v1705 = vmul.f32 %v1693, %v1703
        %v1706 = vmul.f32 %v1694, %v1703
        %v1707 = vmul.f32 %v1695, %v1703
        %v1708 = vmul.f32 %v1696, %v1703
        %v1709 = vmul.f32 %v1697, %v1703
        %v1710 = vmul.f32 %v1698, %v1703
        %v1711 = vmul.f32 %v1699, %v1703
        %v1712 = vlaneseq
        %v1713 = vshrl.u32 %v1712, 7
        %v1714 = vsub.s32 0, %v1713
        %v1715 = vrot.slane %v1579, %v1714
        %v1716 = vadd.f32 %v1704, %v1715
        %v1717 = vadd.f32 %v1705, %v1715
        %v1718 = vadd.f32 %v1706, %v1715
        %v1719 = vadd.f32 %v1707, %v1715
        %v1720 = vadd.f32 %v1708, %v1715
        %v1721 = vadd.f32 %v1709, %v1715
        %v1722 = vadd.f32 %v1710, %v1715
        %v1723 = vadd.f32 %v1711, %v1715
        %v1724 = vld [vmem:[%s6] sm:$0xff]
        %v1725 = vld [vmem:[%s6 + $0x8] sm:$0xff]
        %v1726 = vld [vmem:[%s6 + $0x10] sm:$0xff]
        %v1727 = vld [vmem:[%s6 + $0x18] sm:$0xff]
        %v1728 = vld [vmem:[%s1 + $0x10] sm:$0x1]
        %v1729 = vlaneseq
        %v1730 = vshrl.u32 %v1729, 7
        %v1731 = vsub.s32 0, %v1730
        %v1732 = vrot.slane %v1728, %v1731
        %v1734 = vsel %vm1133, %v1716, 0
        %v1737 = vsel %vm1133, %v1717, 0
        %v1740 = vsel %vm1133, %v1718, 0
        %v1743 = vsel %vm1133, %v1719, 0
        %v1746 = vsel %vm1133, %v1720, 0
        %v1749 = vsel %vm1133, %v1721, 0
        %v1752 = vsel %vm1133, %v1722, 0
        %v1755 = vsel %vm1133, %v1723, 0
        %1757 = vmatprep.subr.mxu0 0.0
        %1758 = vmatpush1.msra.mxu0 0.0
        %1759 = vmatprep.subr.mxu0 0.0
        %1760 = vmatpush1.msra.mxu0 0.0
        %1761 = vmatprep.subr.mxu0 0.0
        %1762 = vmatpush1.msra.mxu0 0.0
        %1763 = vmatprep.subr.mxu0 0.0
        %1764 = vmatpush1.msra.mxu0 0.0
        %1765 = vmatprep.subr.mxu0 0.0
        %1766 = vmatpush1.msra.mxu0 0.0
        %1767 = vmatprep.subr.mxu0 0.0
        %1768 = vmatpush1.msra.mxu0 0.0
        %1769 = vmatprep.subr.mxu0 0.0
        %1770 = vmatpush1.msra.mxu0 0.0
        %1771 = vmatprep.subr.mxu0 0.0
        %1772 = vmatpush1.msra.mxu0 0.0
        %1773 = vmatprep.subr.mxu0 0.0
        %1774 = vmatpush1.msra.mxu0 0.0
        %1775 = vmatprep.subr.mxu0 0.0
        %1776 = vmatpush1.msra.mxu0 0.0
        %1777 = vmatprep.subr.mxu0 0.0
        %1778 = vmatpush1.msra.mxu0 0.0
        %1779 = vmatprep.subr.mxu0 0.0
        %1780 = vmatpush1.msra.mxu0 0.0
        %1781 = vmatprep.subr.mxu0 0.0
        %1782 = vmatpush1.msra.mxu0 %v1727
        %1783 = vmatprep.subr.mxu0 0.0
        %1784 = vmatpush1.msra.mxu0 %v1726
        %1785 = vmatprep.subr.mxu0 0.0
        %1786 = vmatpush1.msra.mxu0 %v1725
        %1787 = vmatprep.subr.mxu0 0.0
        %1788 = vmatpush1.msra.mxu0 %v1724
        %1789 = vmatprep.subr.mxu0 0.0
        %1790 = vmatpush2.msra.mxu0 0.0
        %1791 = vmatprep.subr.mxu0 0.0
        %1792 = vmatpush2.msra.mxu0 0.0
        %1793 = vmatprep.subr.mxu0 0.0
        %1794 = vmatpush2.msra.mxu0 0.0
        %1795 = vmatprep.subr.mxu0 0.0
        %1796 = vmatpush2.msra.mxu0 0.0
        %1797 = vmatprep.subr.mxu0 0.0
        %1798 = vmatpush2.msra.mxu0 0.0
        %1799 = vmatprep.subr.mxu0 0.0
        %1800 = vmatpush2.msra.mxu0 0.0
        %1801 = vmatprep.subr.mxu0 0.0
        %1802 = vmatpush2.msra.mxu0 0.0
        %1803 = vmatprep.subr.mxu0 0.0
        %1804 = vmatpush2.msra.mxu0 0.0
        %1805 = vmatprep.subr.mxu0 0.0
        %1806 = vmatpush2.msra.mxu0 0.0
        %1807 = vmatprep.subr.mxu0 0.0
        %1808 = vmatpush2.msra.mxu0 0.0
        %1809 = vmatprep.subr.mxu0 0.0
        %1810 = vmatpush2.msra.mxu0 0.0
        %1811 = vmatprep.subr.mxu0 0.0
        %1812 = vmatpush2.msra.mxu0 0.0
        %1813 = vmatprep.subr.mxu0 0.0
        %1814 = vmatpush2.msra.mxu0 0.0
        %1815 = vmatprep.subr.mxu0 0.0
        %1816 = vmatpush2.msra.mxu0 0.0
        %1817 = vmatprep.subr.mxu0 0.0
        %1818 = vmatpush2.msra.mxu0 0.0
        %1819 = vmatprep.subr.mxu0 0.0
        %1820 = vmatpush2.msra.mxu0 0.0
        %1821 = vmatprep.mubr.f32.mxu0 0.0
        %1822 = vmatmul.mubr.f32.gmra.mxu0 %v1734
        %v1823 = vpop.f32.mrf.mxu0
        %v1824 = vadd.f32 %v1732, %v1823
        %v1825 = vpop.f32.mrf.mxu0
        %1826 = vmatprep.mubr.f32.mxu0 0.0
        %1827 = vmatmul.mubr.f32.gmra.mxu0 %v1737
        %v1828 = vpop.f32.mrf.mxu0
        %v1829 = vadd.f32 %v1732, %v1828
        %v1830 = vpop.f32.mrf.mxu0
        %1831 = vmatprep.mubr.f32.mxu0 0.0
        %1832 = vmatmul.mubr.f32.gmra.mxu0 %v1740
        %v1833 = vpop.f32.mrf.mxu0
        %v1834 = vadd.f32 %v1732, %v1833
        %v1835 = vpop.f32.mrf.mxu0
        %1836 = vmatprep.mubr.f32.mxu0 0.0
        %1837 = vmatmul.mubr.f32.gmra.mxu0 %v1743
        %v1838 = vpop.f32.mrf.mxu0
        %v1839 = vadd.f32 %v1732, %v1838
        %v1840 = vpop.f32.mrf.mxu0
        %1841 = vmatprep.mubr.f32.mxu0 0.0
        %1842 = vmatmul.mubr.f32.gmra.mxu0 %v1746
        %v1843 = vpop.f32.mrf.mxu0
        %v1844 = vadd.f32 %v1732, %v1843
        %v1845 = vpop.f32.mrf.mxu0
        %1846 = vmatprep.mubr.f32.mxu0 0.0
        %1847 = vmatmul.mubr.f32.gmra.mxu0 %v1749
        %v1848 = vpop.f32.mrf.mxu0
        %v1849 = vadd.f32 %v1732, %v1848
        %v1850 = vpop.f32.mrf.mxu0
        %1851 = vmatprep.mubr.f32.mxu0 0.0
        %1852 = vmatmul.mubr.f32.gmra.mxu0 %v1752
        %v1853 = vpop.f32.mrf.mxu0
        %v1854 = vadd.f32 %v1732, %v1853
        %v1855 = vpop.f32.mrf.mxu0
        %1856 = vmatprep.mubr.f32.mxu0 0.0
        %1857 = vmatmul.mubr.f32.gmra.mxu0 %v1755
        %v1858 = vpop.f32.mrf.mxu0
        %v1859 = vadd.f32 %v1732, %v1858
        %v1860 = vpop.f32.mrf.mxu0
        %1861 = vdwg.mxu0
        %vm1862 = vcmp.gt.f32.partialorder %v1824, 0.0
        %vm1863 = vcmp.gt.f32.partialorder %v1829, 0.0
        %vm1864 = vcmp.gt.f32.partialorder %v1834, 0.0
        %vm1865 = vcmp.gt.f32.partialorder %v1839, 0.0
        %vm1866 = vcmp.gt.f32.partialorder %v1844, 0.0
        %vm1867 = vcmp.gt.f32.partialorder %v1849, 0.0
        %vm1868 = vcmp.gt.f32.partialorder %v1854, 0.0
        %vm1869 = vcmp.gt.f32.partialorder %v1859, 0.0
        %v1870 = vmul.f32 %v1824, 0.2
        %v1871 = vmul.f32 %v1829, 0.2
        %v1872 = vmul.f32 %v1834, 0.2
        %v1873 = vmul.f32 %v1839, 0.2
        %v1874 = vmul.f32 %v1844, 0.2
        %v1875 = vmul.f32 %v1849, 0.2
        %v1876 = vmul.f32 %v1854, 0.2
        %v1877 = vmul.f32 %v1859, 0.2
        %v1878 = vsel %vm1862, %v1824, %v1870
        %v1879 = vsel %vm1863, %v1829, %v1871
        %v1880 = vsel %vm1864, %v1834, %v1872
        %v1881 = vsel %vm1865, %v1839, %v1873
        %v1882 = vsel %vm1866, %v1844, %v1874
        %v1883 = vsel %vm1867, %v1849, %v1875
        %v1884 = vsel %vm1868, %v1854, %v1876
        %v1885 = vsel %vm1869, %v1859, %v1877
        %v1886 = vld [vmem:[%s1 + $0x11] sm:$0x1]
        %v1887 = vld [vmem:[%s1 + $0x12] sm:$0x1]
        %v1888 = vsel %vm820, %v1878, 0.0
        %1889 = vadd.xlane.f32.xlu0 %v1888
        %v1890 = vpop.xlane.xlu0 %1889
        %v1891 = vsel %vm820, %v1879, 0.0
        %1892 = vadd.xlane.f32.xlu0 %v1891
        %v1893 = vpop.xlane.xlu0 %1892
        %v1894 = vsel %vm820, %v1880, 0.0
        %1895 = vadd.xlane.f32.xlu0 %v1894
        %v1896 = vpop.xlane.xlu0 %1895
        %v1897 = vsel %vm820, %v1881, 0.0
        %1898 = vadd.xlane.f32.xlu0 %v1897
        %v1899 = vpop.xlane.xlu0 %1898
        %v1900 = vsel %vm820, %v1882, 0.0
        %1901 = vadd.xlane.f32.xlu0 %v1900
        %v1902 = vpop.xlane.xlu0 %1901
        %v1903 = vsel %vm820, %v1883, 0.0
        %1904 = vadd.xlane.f32.xlu0 %v1903
        %v1905 = vpop.xlane.xlu0 %1904
        %v1906 = vsel %vm820, %v1884, 0.0
        %1907 = vadd.xlane.f32.xlu0 %v1906
        %v1908 = vpop.xlane.xlu0 %1907
        %v1909 = vsel %vm820, %v1885, 0.0
        %1910 = vadd.xlane.f32.xlu0 %v1909
        %v1911 = vpop.xlane.xlu0 %1910
        %v1912 = vmul.f32 %v1890, 0.015625
        %v1913 = vmul.f32 %v1893, 0.015625
        %v1914 = vmul.f32 %v1896, 0.015625
        %v1915 = vmul.f32 %v1899, 0.015625
        %v1916 = vmul.f32 %v1902, 0.015625
        %v1917 = vmul.f32 %v1905, 0.015625
        %v1918 = vmul.f32 %v1908, 0.015625
        %v1919 = vmul.f32 %v1911, 0.015625
        %v1920 = vmul.f32 %v1878, %v1878
        %v1921 = vmul.f32 %v1879, %v1879
        %v1922 = vmul.f32 %v1880, %v1880
        %v1923 = vmul.f32 %v1881, %v1881
        %v1924 = vmul.f32 %v1882, %v1882
        %v1925 = vmul.f32 %v1883, %v1883
        %v1926 = vmul.f32 %v1884, %v1884
        %v1927 = vmul.f32 %v1885, %v1885
        %v1928 = vsel %vm820, %v1920, 0.0
        %1929 = vadd.xlane.f32.xlu0 %v1928
        %v1930 = vpop.xlane.xlu0 %1929
        %v1931 = vsel %vm820, %v1921, 0.0
        %1932 = vadd.xlane.f32.xlu0 %v1931
        %v1933 = vpop.xlane.xlu0 %1932
        %v1934 = vsel %vm820, %v1922, 0.0
        %1935 = vadd.xlane.f32.xlu0 %v1934
        %v1936 = vpop.xlane.xlu0 %1935
        %v1937 = vsel %vm820, %v1923, 0.0
        %1938 = vadd.xlane.f32.xlu0 %v1937
        %v1939 = vpop.xlane.xlu0 %1938
        %v1940 = vsel %vm820, %v1924, 0.0
        %1941 = vadd.xlane.f32.xlu0 %v1940
        %v1942 = vpop.xlane.xlu0 %1941
        %v1943 = vsel %vm820, %v1925, 0.0
        %1944 = vadd.xlane.f32.xlu0 %v1943
        %v1945 = vpop.xlane.xlu0 %1944
        %v1946 = vsel %vm820, %v1926, 0.0
        %1947 = vadd.xlane.f32.xlu0 %v1946
        %v1948 = vpop.xlane.xlu0 %1947
        %v1949 = vsel %vm820, %v1927, 0.0
        %1950 = vadd.xlane.f32.xlu0 %v1949
        %v1951 = vpop.xlane.xlu0 %1950
        %v1952 = vmul.f32 %v1930, 0.015625
        %v1953 = vmul.f32 %v1933, 0.015625
        %v1954 = vmul.f32 %v1936, 0.015625
        %v1955 = vmul.f32 %v1939, 0.015625
        %v1956 = vmul.f32 %v1942, 0.015625
        %v1957 = vmul.f32 %v1945, 0.015625
        %v1958 = vmul.f32 %v1948, 0.015625
        %v1959 = vmul.f32 %v1951, 0.015625
        %v1960 = vmul.f32 %v1912, %v1912
        %v1961 = vmul.f32 %v1913, %v1913
        %v1962 = vmul.f32 %v1914, %v1914
        %v1963 = vmul.f32 %v1915, %v1915
        %v1964 = vmul.f32 %v1916, %v1916
        %v1965 = vmul.f32 %v1917, %v1917
        %v1966 = vmul.f32 %v1918, %v1918
        %v1967 = vmul.f32 %v1919, %v1919
        %v1968 = vsub.f32 %v1952, %v1960
        %v1969 = vsub.f32 %v1953, %v1961
        %v1970 = vsub.f32 %v1954, %v1962
        %v1971 = vsub.f32 %v1955, %v1963
        %v1972 = vsub.f32 %v1956, %v1964
        %v1973 = vsub.f32 %v1957, %v1965
        %v1974 = vsub.f32 %v1958, %v1966
        %v1975 = vsub.f32 %v1959, %v1967
        %v1976 = vsub.f32 %v1878, %v1912
        %v1977 = vsub.f32 %v1879, %v1913
        %v1978 = vsub.f32 %v1880, %v1914
        %v1979 = vsub.f32 %v1881, %v1915
        %v1980 = vsub.f32 %v1882, %v1916
        %v1981 = vsub.f32 %v1883, %v1917
        %v1982 = vsub.f32 %v1884, %v1918
        %v1983 = vsub.f32 %v1885, %v1919
        %v1984 = vadd.f32 %v1968, 1e-05
        %v1985 = vadd.f32 %v1969, 1e-05
        %v1986 = vadd.f32 %v1970, 1e-05
        %v1987 = vadd.f32 %v1971, 1e-05
        %v1988 = vadd.f32 %v1972, 1e-05
        %v1989 = vadd.f32 %v1973, 1e-05
        %v1990 = vadd.f32 %v1974, 1e-05
        %v1991 = vadd.f32 %v1975, 1e-05
        %v1992 = vrsqrt.pop %v1984
        %v1993 = vrsqrt.pop %v1985
        %v1994 = vrsqrt.pop %v1986
        %v1995 = vrsqrt.pop %v1987
        %v1996 = vrsqrt.pop %v1988
        %v1997 = vrsqrt.pop %v1989
        %v1998 = vrsqrt.pop %v1990
        %v1999 = vrsqrt.pop %v1991
        %v2000 = vmul.f32 %v1976, %v1992
        %v2001 = vmul.f32 %v1977, %v1993
        %v2002 = vmul.f32 %v1978, %v1994
        %v2003 = vmul.f32 %v1979, %v1995
        %v2004 = vmul.f32 %v1980, %v1996
        %v2005 = vmul.f32 %v1981, %v1997
        %v2006 = vmul.f32 %v1982, %v1998
        %v2007 = vmul.f32 %v1983, %v1999
        %v2008 = vlaneseq
        %v2009 = vshrl.u32 %v2008, 7
        %v2010 = vsub.s32 0, %v2009
        %v2011 = vrot.slane %v1886, %v2010
        %v2012 = vmul.f32 %v2000, %v2011
        %v2013 = vmul.f32 %v2001, %v2011
        %v2014 = vmul.f32 %v2002, %v2011
        %v2015 = vmul.f32 %v2003, %v2011
        %v2016 = vmul.f32 %v2004, %v2011
        %v2017 = vmul.f32 %v2005, %v2011
        %v2018 = vmul.f32 %v2006, %v2011
        %v2019 = vmul.f32 %v2007, %v2011
        %v2020 = vlaneseq
        %v2021 = vshrl.u32 %v2020, 7
        %v2022 = vsub.s32 0, %v2021
        %v2023 = vrot.slane %v1887, %v2022
        %v2024 = vadd.f32 %v2012, %v2023
        %v2025 = vadd.f32 %v2013, %v2023
        %v2026 = vadd.f32 %v2014, %v2023
        %v2027 = vadd.f32 %v2015, %v2023
        %v2028 = vadd.f32 %v2016, %v2023
        %v2029 = vadd.f32 %v2017, %v2023
        %v2030 = vadd.f32 %v2018, %v2023
        %v2031 = vadd.f32 %v2019, %v2023
        %v2032 = vld [vmem:[%s7] sm:$0xff]
        %v2033 = vld [vmem:[%s7 + $0x8] sm:$0xff]
        %v2034 = vld [vmem:[%s7 + $0x10] sm:$0xff]
        %v2035 = vld [vmem:[%s7 + $0x18] sm:$0xff]
        %v2036 = vld [vmem:[%s7 + $0x20] sm:$0xff]
        %v2037 = vld [vmem:[%s7 + $0x28] sm:$0xff]
        %v2038 = vld [vmem:[%s7 + $0x30] sm:$0xff]
        %v2039 = vld [vmem:[%s7 + $0x38] sm:$0xff]
        %v2040 = vld [vmem:[%s1 + $0x13] sm:$0x1]
        %v2041 = vlaneseq
        %v2042 = vshrl.u32 %v2041, 7
        %v2043 = vsub.s32 0, %v2042
        %v2044 = vrot.slane %v2040, %v2043
        %v2046 = vsel %vm820, %v2024, 0
        %v2049 = vsel %vm820, %v2025, 0
        %v2052 = vsel %vm820, %v2026, 0
        %v2055 = vsel %vm820, %v2027, 0
        %v2058 = vsel %vm820, %v2028, 0
        %v2061 = vsel %vm820, %v2029, 0
        %v2064 = vsel %vm820, %v2030, 0
        %v2067 = vsel %vm820, %v2031, 0
        %2069 = vmatprep.subr.mxu0 0.0
        %2070 = vmatpush1.msra.mxu0 0.0
        %2071 = vmatprep.subr.mxu0 0.0
        %2072 = vmatpush1.msra.mxu0 0.0
        %2073 = vmatprep.subr.mxu0 0.0
        %2074 = vmatpush1.msra.mxu0 0.0
        %2075 = vmatprep.subr.mxu0 0.0
        %2076 = vmatpush1.msra.mxu0 0.0
        %2077 = vmatprep.subr.mxu0 0.0
        %2078 = vmatpush1.msra.mxu0 0.0
        %2079 = vmatprep.subr.mxu0 0.0
        %2080 = vmatpush1.msra.mxu0 0.0
        %2081 = vmatprep.subr.mxu0 0.0
        %2082 = vmatpush1.msra.mxu0 0.0
        %2083 = vmatprep.subr.mxu0 0.0
        %2084 = vmatpush1.msra.mxu0 0.0
        %2085 = vmatprep.subr.mxu0 0.0
        %2086 = vmatpush1.msra.mxu0 %v2039
        %2087 = vmatprep.subr.mxu0 0.0
        %2088 = vmatpush1.msra.mxu0 %v2038
        %2089 = vmatprep.subr.mxu0 0.0
        %2090 = vmatpush1.msra.mxu0 %v2037
        %2091 = vmatprep.subr.mxu0 0.0
        %2092 = vmatpush1.msra.mxu0 %v2036
        %2093 = vmatprep.subr.mxu0 0.0
        %2094 = vmatpush1.msra.mxu0 %v2035
        %2095 = vmatprep.subr.mxu0 0.0
        %2096 = vmatpush1.msra.mxu0 %v2034
        %2097 = vmatprep.subr.mxu0 0.0
        %2098 = vmatpush1.msra.mxu0 %v2033
        %2099 = vmatprep.subr.mxu0 0.0
        %2100 = vmatpush1.msra.mxu0 %v2032
        %2101 = vmatprep.subr.mxu0 0.0
        %2102 = vmatpush2.msra.mxu0 0.0
        %2103 = vmatprep.subr.mxu0 0.0
        %2104 = vmatpush2.msra.mxu0 0.0
        %2105 = vmatprep.subr.mxu0 0.0
        %2106 = vmatpush2.msra.mxu0 0.0
        %2107 = vmatprep.subr.mxu0 0.0
        %2108 = vmatpush2.msra.mxu0 0.0
        %2109 = vmatprep.subr.mxu0 0.0
        %2110 = vmatpush2.msra.mxu0 0.0
        %2111 = vmatprep.subr.mxu0 0.0
        %2112 = vmatpush2.msra.mxu0 0.0
        %2113 = vmatprep.subr.mxu0 0.0
        %2114 = vmatpush2.msra.mxu0 0.0
        %2115 = vmatprep.subr.mxu0 0.0
        %2116 = vmatpush2.msra.mxu0 0.0
        %2117 = vmatprep.subr.mxu0 0.0
        %2118 = vmatpush2.msra.mxu0 0.0
        %2119 = vmatprep.subr.mxu0 0.0
        %2120 = vmatpush2.msra.mxu0 0.0
        %2121 = vmatprep.subr.mxu0 0.0
        %2122 = vmatpush2.msra.mxu0 0.0
        %2123 = vmatprep.subr.mxu0 0.0
        %2124 = vmatpush2.msra.mxu0 0.0
        %2125 = vmatprep.subr.mxu0 0.0
        %2126 = vmatpush2.msra.mxu0 0.0
        %2127 = vmatprep.subr.mxu0 0.0
        %2128 = vmatpush2.msra.mxu0 0.0
        %2129 = vmatprep.subr.mxu0 0.0
        %2130 = vmatpush2.msra.mxu0 0.0
        %2131 = vmatprep.subr.mxu0 0.0
        %2132 = vmatpush2.msra.mxu0 0.0
        %2133 = vmatprep.mubr.f32.mxu0 0.0
        %2134 = vmatmul.mubr.f32.gmra.mxu0 %v2046
        %v2135 = vpop.f32.mrf.mxu0
        %v2136 = vadd.f32 %v2044, %v2135
        %v2137 = vpop.f32.mrf.mxu0
        %2138 = vmatprep.mubr.f32.mxu0 0.0
        %2139 = vmatmul.mubr.f32.gmra.mxu0 %v2049
        %v2140 = vpop.f32.mrf.mxu0
        %v2141 = vadd.f32 %v2044, %v2140
        %v2142 = vpop.f32.mrf.mxu0
        %2143 = vmatprep.mubr.f32.mxu0 0.0
        %2144 = vmatmul.mubr.f32.gmra.mxu0 %v2052
        %v2145 = vpop.f32.mrf.mxu0
        %v2146 = vadd.f32 %v2044, %v2145
        %v2147 = vpop.f32.mrf.mxu0
        %2148 = vmatprep.mubr.f32.mxu0 0.0
        %2149 = vmatmul.mubr.f32.gmra.mxu0 %v2055
        %v2150 = vpop.f32.mrf.mxu0
        %v2151 = vadd.f32 %v2044, %v2150
        %v2152 = vpop.f32.mrf.mxu0
        %2153 = vmatprep.mubr.f32.mxu0 0.0
        %2154 = vmatmul.mubr.f32.gmra.mxu0 %v2058
        %v2155 = vpop.f32.mrf.mxu0
        %v2156 = vadd.f32 %v2044, %v2155
        %v2157 = vpop.f32.mrf.mxu0
        %2158 = vmatprep.mubr.f32.mxu0 0.0
        %2159 = vmatmul.mubr.f32.gmra.mxu0 %v2061
        %v2160 = vpop.f32.mrf.mxu0
        %v2161 = vadd.f32 %v2044, %v2160
        %v2162 = vpop.f32.mrf.mxu0
        %2163 = vmatprep.mubr.f32.mxu0 0.0
        %2164 = vmatmul.mubr.f32.gmra.mxu0 %v2064
        %v2165 = vpop.f32.mrf.mxu0
        %v2166 = vadd.f32 %v2044, %v2165
        %v2167 = vpop.f32.mrf.mxu0
        %2168 = vmatprep.mubr.f32.mxu0 0.0
        %2169 = vmatmul.mubr.f32.gmra.mxu0 %v2067
        %v2170 = vpop.f32.mrf.mxu0
        %v2171 = vadd.f32 %v2044, %v2170
        %v2172 = vpop.f32.mrf.mxu0
        %2173 = vdwg.mxu0
        %vm2174 = vcmp.gt.f32.partialorder %v2136, 0.0
        %vm2175 = vcmp.gt.f32.partialorder %v2141, 0.0
        %vm2176 = vcmp.gt.f32.partialorder %v2146, 0.0
        %vm2177 = vcmp.gt.f32.partialorder %v2151, 0.0
        %vm2178 = vcmp.gt.f32.partialorder %v2156, 0.0
        %vm2179 = vcmp.gt.f32.partialorder %v2161, 0.0
        %vm2180 = vcmp.gt.f32.partialorder %v2166, 0.0
        %vm2181 = vcmp.gt.f32.partialorder %v2171, 0.0
        %v2182 = vmul.f32 %v2136, 0.2
        %v2183 = vmul.f32 %v2141, 0.2
        %v2184 = vmul.f32 %v2146, 0.2
        %v2185 = vmul.f32 %v2151, 0.2
        %v2186 = vmul.f32 %v2156, 0.2
        %v2187 = vmul.f32 %v2161, 0.2
        %v2188 = vmul.f32 %v2166, 0.2
        %v2189 = vmul.f32 %v2171, 0.2
        %v2190 = vsel %vm2174, %v2136, %v2182
        %v2191 = vsel %vm2175, %v2141, %v2183
        %v2192 = vsel %vm2176, %v2146, %v2184
        %v2193 = vsel %vm2177, %v2151, %v2185
        %v2194 = vsel %vm2178, %v2156, %v2186
        %v2195 = vsel %vm2179, %v2161, %v2187
        %v2196 = vsel %vm2180, %v2166, %v2188
        %v2197 = vsel %vm2181, %v2171, %v2189
        %v2198 = vld [vmem:[%s1 + $0x14] sm:$0x1]
        %v2199 = vld [vmem:[%s1 + $0x15] sm:$0x1]
        %2200 = vadd.xlane.f32.xlu0 %v2190
        %v2201 = vpop.xlane.xlu0 %2200
        %2202 = vadd.xlane.f32.xlu0 %v2191
        %v2203 = vpop.xlane.xlu0 %2202
        %2204 = vadd.xlane.f32.xlu0 %v2192
        %v2205 = vpop.xlane.xlu0 %2204
        %2206 = vadd.xlane.f32.xlu0 %v2193
        %v2207 = vpop.xlane.xlu0 %2206
        %2208 = vadd.xlane.f32.xlu0 %v2194
        %v2209 = vpop.xlane.xlu0 %2208
        %2210 = vadd.xlane.f32.xlu0 %v2195
        %v2211 = vpop.xlane.xlu0 %2210
        %2212 = vadd.xlane.f32.xlu0 %v2196
        %v2213 = vpop.xlane.xlu0 %2212
        %2214 = vadd.xlane.f32.xlu0 %v2197
        %v2215 = vpop.xlane.xlu0 %2214
        %v2216 = vmul.f32 %v2201, 0.0078125
        %v2217 = vmul.f32 %v2203, 0.0078125
        %v2218 = vmul.f32 %v2205, 0.0078125
        %v2219 = vmul.f32 %v2207, 0.0078125
        %v2220 = vmul.f32 %v2209, 0.0078125
        %v2221 = vmul.f32 %v2211, 0.0078125
        %v2222 = vmul.f32 %v2213, 0.0078125
        %v2223 = vmul.f32 %v2215, 0.0078125
        %v2224 = vmul.f32 %v2190, %v2190
        %v2225 = vmul.f32 %v2191, %v2191
        %v2226 = vmul.f32 %v2192, %v2192
        %v2227 = vmul.f32 %v2193, %v2193
        %v2228 = vmul.f32 %v2194, %v2194
        %v2229 = vmul.f32 %v2195, %v2195
        %v2230 = vmul.f32 %v2196, %v2196
        %v2231 = vmul.f32 %v2197, %v2197
        %2232 = vadd.xlane.f32.xlu0 %v2224
        %v2233 = vpop.xlane.xlu0 %2232
        %2234 = vadd.xlane.f32.xlu0 %v2225
        %v2235 = vpop.xlane.xlu0 %2234
        %2236 = vadd.xlane.f32.xlu0 %v2226
        %v2237 = vpop.xlane.xlu0 %2236
        %2238 = vadd.xlane.f32.xlu0 %v2227
        %v2239 = vpop.xlane.xlu0 %2238
        %2240 = vadd.xlane.f32.xlu0 %v2228
        %v2241 = vpop.xlane.xlu0 %2240
        %2242 = vadd.xlane.f32.xlu0 %v2229
        %v2243 = vpop.xlane.xlu0 %2242
        %2244 = vadd.xlane.f32.xlu0 %v2230
        %v2245 = vpop.xlane.xlu0 %2244
        %2246 = vadd.xlane.f32.xlu0 %v2231
        %v2247 = vpop.xlane.xlu0 %2246
        %v2248 = vmul.f32 %v2233, 0.0078125
        %v2249 = vmul.f32 %v2235, 0.0078125
        %v2250 = vmul.f32 %v2237, 0.0078125
        %v2251 = vmul.f32 %v2239, 0.0078125
        %v2252 = vmul.f32 %v2241, 0.0078125
        %v2253 = vmul.f32 %v2243, 0.0078125
        %v2254 = vmul.f32 %v2245, 0.0078125
        %v2255 = vmul.f32 %v2247, 0.0078125
        %v2256 = vmul.f32 %v2216, %v2216
        %v2257 = vmul.f32 %v2217, %v2217
        %v2258 = vmul.f32 %v2218, %v2218
        %v2259 = vmul.f32 %v2219, %v2219
        %v2260 = vmul.f32 %v2220, %v2220
        %v2261 = vmul.f32 %v2221, %v2221
        %v2262 = vmul.f32 %v2222, %v2222
        %v2263 = vmul.f32 %v2223, %v2223
        %v2264 = vsub.f32 %v2248, %v2256
        %v2265 = vsub.f32 %v2249, %v2257
        %v2266 = vsub.f32 %v2250, %v2258
        %v2267 = vsub.f32 %v2251, %v2259
        %v2268 = vsub.f32 %v2252, %v2260
        %v2269 = vsub.f32 %v2253, %v2261
        %v2270 = vsub.f32 %v2254, %v2262
        %v2271 = vsub.f32 %v2255, %v2263
        %v2272 = vsub.f32 %v2190, %v2216
        %v2273 = vsub.f32 %v2191, %v2217
        %v2274 = vsub.f32 %v2192, %v2218
        %v2275 = vsub.f32 %v2193, %v2219
        %v2276 = vsub.f32 %v2194, %v2220
        %v2277 = vsub.f32 %v2195, %v2221
        %v2278 = vsub.f32 %v2196, %v2222
        %v2279 = vsub.f32 %v2197, %v2223
        %v2280 = vadd.f32 %v2264, 1e-05
        %v2281 = vadd.f32 %v2265, 1e-05
        %v2282 = vadd.f32 %v2266, 1e-05
        %v2283 = vadd.f32 %v2267, 1e-05
        %v2284 = vadd.f32 %v2268, 1e-05
        %v2285 = vadd.f32 %v2269, 1e-05
        %v2286 = vadd.f32 %v2270, 1e-05
        %v2287 = vadd.f32 %v2271, 1e-05
        %v2288 = vrsqrt.pop %v2280
        %v2289 = vrsqrt.pop %v2281
        %v2290 = vrsqrt.pop %v2282
        %v2291 = vrsqrt.pop %v2283
        %v2292 = vrsqrt.pop %v2284
        %v2293 = vrsqrt.pop %v2285
        %v2294 = vrsqrt.pop %v2286
        %v2295 = vrsqrt.pop %v2287
        %v2296 = vmul.f32 %v2272, %v2288
        %v2297 = vmul.f32 %v2273, %v2289
        %v2298 = vmul.f32 %v2274, %v2290
        %v2299 = vmul.f32 %v2275, %v2291
        %v2300 = vmul.f32 %v2276, %v2292
        %v2301 = vmul.f32 %v2277, %v2293
        %v2302 = vmul.f32 %v2278, %v2294
        %v2303 = vmul.f32 %v2279, %v2295
        %v2304 = vlaneseq
        %v2305 = vshrl.u32 %v2304, 7
        %v2306 = vsub.s32 0, %v2305
        %v2307 = vrot.slane %v2198, %v2306
        %v2308 = vmul.f32 %v2296, %v2307
        %v2309 = vmul.f32 %v2297, %v2307
        %v2310 = vmul.f32 %v2298, %v2307
        %v2311 = vmul.f32 %v2299, %v2307
        %v2312 = vmul.f32 %v2300, %v2307
        %v2313 = vmul.f32 %v2301, %v2307
        %v2314 = vmul.f32 %v2302, %v2307
        %v2315 = vmul.f32 %v2303, %v2307
        %v2316 = vlaneseq
        %v2317 = vshrl.u32 %v2316, 7
        %v2318 = vsub.s32 0, %v2317
        %v2319 = vrot.slane %v2199, %v2318
        %v2320 = vadd.f32 %v2308, %v2319
        %v2321 = vadd.f32 %v2309, %v2319
        %v2322 = vadd.f32 %v2310, %v2319
        %v2323 = vadd.f32 %v2311, %v2319
        %v2324 = vadd.f32 %v2312, %v2319
        %v2325 = vadd.f32 %v2313, %v2319
        %v2326 = vadd.f32 %v2314, %v2319
        %v2327 = vadd.f32 %v2315, %v2319
        %v2328 = vld [vmem:[%s8] sm:$0xff]
        %v2329 = vld [vmem:[%s8 + $0x8] sm:$0xff]
        %v2330 = vld [vmem:[%s8 + $0x10] sm:$0xff]
        %v2331 = vld [vmem:[%s8 + $0x18] sm:$0xff]
        %v2332 = vld [vmem:[%s8 + $0x20] sm:$0xff]
        %v2333 = vld [vmem:[%s8 + $0x28] sm:$0xff]
        %v2334 = vld [vmem:[%s8 + $0x30] sm:$0xff]
        %v2335 = vld [vmem:[%s8 + $0x38] sm:$0xff]
        %v2336 = vld [vmem:[%s8 + $0x40] sm:$0xff]
        %v2337 = vld [vmem:[%s8 + $0x48] sm:$0xff]
        %v2338 = vld [vmem:[%s8 + $0x50] sm:$0xff]
        %v2339 = vld [vmem:[%s8 + $0x58] sm:$0xff]
        %v2340 = vld [vmem:[%s8 + $0x60] sm:$0xff]
        %v2341 = vld [vmem:[%s8 + $0x68] sm:$0xff]
        %v2342 = vld [vmem:[%s8 + $0x70] sm:$0xff]
        %v2343 = vld [vmem:[%s8 + $0x78] sm:$0xff]
        %v2344 = vld [vmem:[%s1 + $0x16] sm:$0x1]
        %v2345 = vlaneseq
        %v2346 = vshrl.u32 %v2345, 7
        %v2347 = vsub.s32 0, %v2346
        %v2348 = vrot.slane %v2344, %v2347
        %2349 = vmatprep.subr.mxu0 0.0
        %2350 = vmatpush1.msra.mxu0 %v2343
        %2351 = vmatprep.subr.mxu0 0.0
        %2352 = vmatpush1.msra.mxu0 %v2342
        %2353 = vmatprep.subr.mxu0 0.0
        %2354 = vmatpush1.msra.mxu0 %v2341
        %2355 = vmatprep.subr.mxu0 0.0
        %2356 = vmatpush1.msra.mxu0 %v2340
        %2357 = vmatprep.subr.mxu0 0.0
        %2358 = vmatpush1.msra.mxu0 %v2339
        %2359 = vmatprep.subr.mxu0 0.0
        %2360 = vmatpush1.msra.mxu0 %v2338
        %2361 = vmatprep.subr.mxu0 0.0
        %2362 = vmatpush1.msra.mxu0 %v2337
        %2363 = vmatprep.subr.mxu0 0.0
        %2364 = vmatpush1.msra.mxu0 %v2336
        %2365 = vmatprep.subr.mxu0 0.0
        %2366 = vmatpush1.msra.mxu0 %v2335
        %2367 = vmatprep.subr.mxu0 0.0
        %2368 = vmatpush1.msra.mxu0 %v2334
        %2369 = vmatprep.subr.mxu0 0.0
        %2370 = vmatpush1.msra.mxu0 %v2333
        %2371 = vmatprep.subr.mxu0 0.0
        %2372 = vmatpush1.msra.mxu0 %v2332
        %2373 = vmatprep.subr.mxu0 0.0
        %2374 = vmatpush1.msra.mxu0 %v2331
        %2375 = vmatprep.subr.mxu0 0.0
        %2376 = vmatpush1.msra.mxu0 %v2330
        %2377 = vmatprep.subr.mxu0 0.0
        %2378 = vmatpush1.msra.mxu0 %v2329
        %2379 = vmatprep.subr.mxu0 0.0
        %2380 = vmatpush1.msra.mxu0 %v2328
        %2381 = vmatprep.subr.mxu0 0.0
        %2382 = vmatpush2.msra.mxu0 0.0
        %2383 = vmatprep.subr.mxu0 0.0
        %2384 = vmatpush2.msra.mxu0 0.0
        %2385 = vmatprep.subr.mxu0 0.0
        %2386 = vmatpush2.msra.mxu0 0.0
        %2387 = vmatprep.subr.mxu0 0.0
        %2388 = vmatpush2.msra.mxu0 0.0
        %2389 = vmatprep.subr.mxu0 0.0
        %2390 = vmatpush2.msra.mxu0 0.0
        %2391 = vmatprep.subr.mxu0 0.0
        %2392 = vmatpush2.msra.mxu0 0.0
        %2393 = vmatprep.subr.mxu0 0.0
        %2394 = vmatpush2.msra.mxu0 0.0
        %2395 = vmatprep.subr.mxu0 0.0
        %2396 = vmatpush2.msra.mxu0 0.0
        %2397 = vmatprep.subr.mxu0 0.0
        %2398 = vmatpush2.msra.mxu0 0.0
        %2399 = vmatprep.subr.mxu0 0.0
        %2400 = vmatpush2.msra.mxu0 0.0
        %2401 = vmatprep.subr.mxu0 0.0
        %2402 = vmatpush2.msra.mxu0 0.0
        %2403 = vmatprep.subr.mxu0 0.0
        %2404 = vmatpush2.msra.mxu0 0.0
        %2405 = vmatprep.subr.mxu0 0.0
        %2406 = vmatpush2.msra.mxu0 0.0
        %2407 = vmatprep.subr.mxu0 0.0
        %2408 = vmatpush2.msra.mxu0 0.0
        %2409 = vmatprep.subr.mxu0 0.0
        %2410 = vmatpush2.msra.mxu0 0.0
        %2411 = vmatprep.subr.mxu0 0.0
        %2412 = vmatpush2.msra.mxu0 0.0
        %2413 = vmatprep.mubr.f32.mxu0 0.0
        %2414 = vmatmul.mubr.f32.gmra.mxu0 %v2320
        %v2415 = vpop.f32.mrf.mxu0
        %v2416 = vadd.f32 %v2348, %v2415
        %v2417 = vpop.f32.mrf.mxu0
        %2418 = vmatprep.mubr.f32.mxu0 0.0
        %2419 = vmatmul.mubr.f32.gmra.mxu0 %v2321
        %v2420 = vpop.f32.mrf.mxu0
        %v2421 = vadd.f32 %v2348, %v2420
        %v2422 = vpop.f32.mrf.mxu0
        %2423 = vmatprep.mubr.f32.mxu0 0.0
        %2424 = vmatmul.mubr.f32.gmra.mxu0 %v2322
        %v2425 = vpop.f32.mrf.mxu0
        %v2426 = vadd.f32 %v2348, %v2425
        %v2427 = vpop.f32.mrf.mxu0
        %2428 = vmatprep.mubr.f32.mxu0 0.0
        %2429 = vmatmul.mubr.f32.gmra.mxu0 %v2323
        %v2430 = vpop.f32.mrf.mxu0
        %v2431 = vadd.f32 %v2348, %v2430
        %v2432 = vpop.f32.mrf.mxu0
        %2433 = vmatprep.mubr.f32.mxu0 0.0
        %2434 = vmatmul.mubr.f32.gmra.mxu0 %v2324
        %v2435 = vpop.f32.mrf.mxu0
        %v2436 = vadd.f32 %v2348, %v2435
        %v2437 = vpop.f32.mrf.mxu0
        %2438 = vmatprep.mubr.f32.mxu0 0.0
        %2439 = vmatmul.mubr.f32.gmra.mxu0 %v2325
        %v2440 = vpop.f32.mrf.mxu0
        %v2441 = vadd.f32 %v2348, %v2440
        %v2442 = vpop.f32.mrf.mxu0
        %2443 = vmatprep.mubr.f32.mxu0 0.0
        %2444 = vmatmul.mubr.f32.gmra.mxu0 %v2326
        %v2445 = vpop.f32.mrf.mxu0
        %v2446 = vadd.f32 %v2348, %v2445
        %v2447 = vpop.f32.mrf.mxu0
        %2448 = vmatprep.mubr.f32.mxu0 0.0
        %2449 = vmatmul.mubr.f32.gmra.mxu0 %v2327
        %v2450 = vpop.f32.mrf.mxu0
        %v2451 = vadd.f32 %v2348, %v2450
        %v2452 = vpop.f32.mrf.mxu0
        %2453 = vdwg.mxu0
        %2454 = vst [vmem:[%s326] sm:$0xff] %v2416
        %2455 = vst [vmem:[%s326 + $0x8] sm:$0xff] %v2421
        %2456 = vst [vmem:[%s326 + $0x10] sm:$0xff] %v2426
        %2457 = vst [vmem:[%s326 + $0x18] sm:$0xff] %v2431
        %2458 = vst [vmem:[%s326 + $0x20] sm:$0xff] %v2436
        %2459 = vst [vmem:[%s326 + $0x28] sm:$0xff] %v2441
        %2460 = vst [vmem:[%s326 + $0x30] sm:$0xff] %v2446
        %2461 = vst [vmem:[%s326 + $0x38] sm:$0xff] %v2451
        %2462 = vst.msk [vmem:[%s326] sm:$0xff] %vm1133, %v1378
        %2463 = vst.msk [vmem:[%s326 + $0x8] sm:$0xff] %vm1133, %v1383
        %2464 = vst.msk [vmem:[%s326 + $0x10] sm:$0xff] %vm1133, %v1388
        %2465 = vst.msk [vmem:[%s326 + $0x18] sm:$0xff] %vm1133, %v1393
        %2466 = vst.msk [vmem:[%s326 + $0x20] sm:$0xff] %vm1133, %v1398
        %2467 = vst.msk [vmem:[%s326 + $0x28] sm:$0xff] %vm1133, %v1403
        %2468 = vst.msk [vmem:[%s326 + $0x30] sm:$0xff] %vm1133, %v1408
        %2469 = vst.msk [vmem:[%s326 + $0x38] sm:$0xff] %vm1133, %v1413
        %s2470 = sand.u32 %s225, 1
        %s2471 = scalar_lea.sflag [#allocation3], %s2470
        %s2472 = sand.u32 %s225, 1
        %s2473 = smul.addr %s2472, 64
        %s2474 = scalar_lea.vmem [#allocation2], %s2473
        // Predicated region
        $region57: #{tpu_custom_call.1} parent=55 // pred_check
          %p2475 = pneg %p235
        $region58: #{tpu_custom_call.1} parent=55 // pred_check_branch
          %2477 = sbr.rel (%p2475) target = $region60
        $region59: #{tpu_custom_call.1} parent=55 // pred_region
          %s2478 = smul.u32 8, %s23
          %s2480 = ssub.s32 1024, 1024
          %2481 = vsyncadd %s2471, %s2480
          %s2482 = smul.addr %s2478, 128
          %s2483 = scalar_lea.hbm %s9, %s2482
          %s2484 = sshll.u32 %s2474, 4
          %s2485 = int_to_ptr.vmem [resolvable:$true] %s2484
          %2490 = dma.vmem_to_hbm [thread:$0]  %s2485, 1024, %s2483, %s2471, 128, 128, 8
        $region60: #{tpu_custom_call.1} parent=55 // pred_fallthru
          _
      $region56: #{tpu_custom_call.1} parent=5 // pred_fallthru
        _
      %p2491 = scmp.le.s32.totalorder 2, %s18
      // Predicated region
      $region61: #{tpu_custom_call.1} parent=5 // pred_check
        %p2492 = pneg %p2491
      $region62: #{tpu_custom_call.1} parent=5 // pred_check_branch
        %2494 = sbr.rel (%p2492) target = $region64
      $region63: #{tpu_custom_call.1} parent=5 // pred_region
        %s2495 = ssub.s32 %s18, 2
        // Predicated region
        $region65: #{tpu_custom_call.1} parent=63 // pred_check
          %p2496 = pneg %p241
        $region66: #{tpu_custom_call.1} parent=63 // pred_check_branch
          %2498 = sbr.rel (%p2496) target = $region68
        $region67: #{tpu_custom_call.1} parent=63 // pred_region
          %s2499 = sand.u32 %s226, 1
          %s2500 = scalar_lea.sflag [#allocation3], %s2499
          %s2501 = sand.u32 %s226, 1
          %s2502 = smul.addr %s2501, 64
          %s2503 = scalar_lea.vmem [#allocation2], %s2502
          %2504 = dma.done %s2500, 1024
        $region68: #{tpu_custom_call.1} parent=63 // pred_fallthru
          _
      $region64: #{tpu_custom_call.1} parent=5 // pred_fallthru
        _
    $region6: #{tpu_custom_call.1} parent=1 // loop_footer
      %s22 = sadd.s32 1, %s18
    $region7: #{tpu_custom_call.1} parent=1 // loop_footer_branch
      %17 = sbr.rel target = $region3
    $region8: #{tpu_custom_call.1} parent=1 // loop_exit
      _
    %2505 = vsyncpa [#allocation3], 1
    %s2506 = scalar_lea.sflag [#allocation3], 1
    %2507 = vsyncpa %s2506, 1

</llo_original>
